<compile_context>
chip_gen: v7x
topology: tpu7x:2x2x1
jax: 0.10.0
libtpu: 0.0.40
codegen_flags: <defaults>
</compile_context>

<pallas_src>
import functools

import jax
import jax.numpy as jnp
from jax.experimental import pallas as pl
from jax.experimental.pallas import tpu as pltpu

EPS = 1e-5  # nn.LayerNorm default


def _layer_norm(x, gamma, beta):
    mu = jnp.mean(x, axis=-1, keepdims=True)
    var = jnp.mean((x - mu) ** 2, axis=-1, keepdims=True)
    return (x - mu) * jax.lax.rsqrt(var + EPS) * gamma + beta


def encoder_layer_kernel(n_heads, mxu_dtype,
                         x_ref, pe_ref,
                         wqk_ref, bqk_ref, wv_ref, bv_ref,
                         wo_ref, bo_ref,
                         g1_ref, be1_ref,
                         w1_ref, b1_ref, w2_ref, b2_ref,
                         g2_ref, be2_ref,
                         alpha_ref,            # SMEM scalar (1,1)
                         out_ref):
    dt = mxu_dtype

    x = x_ref[...]                    # (S, E) f32
    pe = pe_ref[...]                  # (S, E) f32
    S, E = x.shape
    H = n_heads
    Dh = E // H
    scale = 1.0 / (Dh ** 0.5)

    qk_in = x + pe                    # 'add' mode: pos added to q/k content only

    # ---- fused Q/K projection (one full-depth matmul) + V projection ----
    qk = jnp.dot(qk_in.astype(dt), wqk_ref[...].astype(dt),
                 preferred_element_type=jnp.float32) + bqk_ref[...]      # (S, 2E)
    v = jnp.dot(x.astype(dt), wv_ref[...].astype(dt),
                preferred_element_type=jnp.float32) + bv_ref[...]        # (S, E)

    q2 = qk[:, :E]
    k2 = qk[:, E:]

    def split_heads(t):               # (S, E) -> (H, S, Dh)
        return jnp.stack([t[:, h * Dh:(h + 1) * Dh] for h in range(H)], axis=0)

    q3 = split_heads(q2) * scale      # scale folded into q (cheaper than scaling scores)
    k3 = split_heads(k2)
    v3 = split_heads(v)

    # ---- head-batched attention: one QK^T dot and one PV dot across all heads ----
    s = jnp.einsum('hqd,hkd->hqk', q3.astype(dt), k3.astype(dt),
                   preferred_element_type=jnp.float32)                   # (H, S, S)
    s = s - jnp.max(s, axis=-1, keepdims=True)
    p = jnp.exp(s)
    p = p * pl.reciprocal(jnp.sum(p, axis=-1, keepdims=True), approx=True)
    o = jnp.einsum('hqk,hkd->hqd', p.astype(dt), v3.astype(dt),
                   preferred_element_type=jnp.float32)                   # (H, S, Dh)

    # ---- fused output projection: concat heads, single (S,E)@(E,E) matmul ----
    o_cat = jnp.concatenate([o[h] for h in range(H)], axis=-1)           # (S, E)
    attn = jnp.dot(o_cat.astype(dt), wo_ref[...].astype(dt),
                   preferred_element_type=jnp.float32) + bo_ref[...]

    # ---- residual + norm1 (DropPath = identity) ----
    x1 = _layer_norm(x + attn, g1_ref[...], be1_ref[...])

    # ---- FFN: Linear -> PReLU -> Linear (alpha read from SMEM scalar path) ----
    h1 = jnp.dot(x1.astype(dt), w1_ref[...].astype(dt),
                 preferred_element_type=jnp.float32) + b1_ref[...]
    alpha = alpha_ref[0, 0]
    h1 = jnp.where(h1 >= 0, h1, alpha * h1)
    ff = jnp.dot(h1.astype(dt), w2_ref[...].astype(dt),
                 preferred_element_type=jnp.float32) + b2_ref[...]

    # ---- residual + norm2 (DropPath = identity) ----
    out_ref[...] = _layer_norm(x1 + ff, g2_ref[...], be2_ref[...])


def dab_detr_encoder_layer(x, x_pe, params, n_heads, mxu_dtype=jnp.float32):
    B, S, E = x.shape
    kernel = functools.partial(encoder_layer_kernel, n_heads, mxu_dtype)

    # Fuse Wq/Wk (and their biases) in the wrapper -> single q/k matmul in-kernel.
    wqk = jnp.concatenate([params['wq'], params['wk']], axis=1).astype(mxu_dtype)
    bqk = jnp.concatenate([params['bq'], params['bk']], axis=1)
    weights = [
        wqk, bqk,
        params['wv'].astype(mxu_dtype), params['bv'],
        params['wo'].astype(mxu_dtype), params['bo'],
        params['g1'], params['be1'],
        params['w1'].astype(mxu_dtype), params['b1'],
        params['w2'].astype(mxu_dtype), params['b2'],
        params['g2'], params['be2'],
    ]
    alpha = params['alpha'].astype(jnp.float32)        # (1, 1) scalar -> SMEM

    def act_spec():
        return pl.BlockSpec((pl.Squeezed(), S, E), lambda b: (b, 0, 0))

    def full_spec(a):
        nd = a.ndim
        return pl.BlockSpec(a.shape, lambda b, _nd=nd: (0,) * _nd)

    return pl.pallas_call(
        kernel,
        out_shape=jax.ShapeDtypeStruct((B, S, E), jnp.float32),
        grid_spec=pltpu.PrefetchScalarGridSpec(
            num_scalar_prefetch=0,
            grid=(B,),
            in_specs=([act_spec(), act_spec()]
                      + [full_spec(w) for w in weights]
                      + [pl.BlockSpec(memory_space=pltpu.MemorySpace.SMEM)]),
            out_specs=pl.BlockSpec((pl.Squeezed(), S, E), lambda b: (b, 0, 0)),
        ),
        compiler_params=pltpu.CompilerParams(dimension_semantics=("parallel",)),
    )(x, x_pe, *weights, alpha)


# ----------------------------- pure-JAX reference -----------------------------
def reference(x, x_pe, p, n_heads, mxu_dtype=jnp.float32):
    B, S, E = x.shape
    Dh = E // n_heads
    dt = mxu_dtype
    scale = 1.0 / (Dh ** 0.5)

    def mm(a, b):
        return jnp.dot(a.astype(dt), b.astype(dt), preferred_element_type=jnp.float32)

    qk = x + x_pe
    q = mm(qk, p['wq']) + p['bq']
    k = mm(qk, p['wk']) + p['bk']
    v = mm(x, p['wv']) + p['bv']
    q = q.reshape(B, S, n_heads, Dh).transpose(0, 2, 1, 3) * scale
    k = k.reshape(B, S, n_heads, Dh).transpose(0, 2, 1, 3)
    v = v.reshape(B, S, n_heads, Dh).transpose(0, 2, 1, 3)
    s = jnp.einsum('bhqd,bhkd->bhqk', q.astype(dt), k.astype(dt),
                   preferred_element_type=jnp.float32)
    pm = jax.nn.softmax(s, axis=-1)
    o = jnp.einsum('bhqk,bhkd->bhqd', pm.astype(dt), v.astype(dt),
                   preferred_element_type=jnp.float32)
    o = o.transpose(0, 2, 1, 3).reshape(B, S, E)
    attn = mm(o, p['wo']) + p['bo']
    x1 = _layer_norm(x + attn, p['g1'], p['be1'])
    h = mm(x1, p['w1']) + p['b1']
    alpha = p['alpha'][0, 0]
    h = jnp.where(h >= 0, h, alpha * h)
    x2 = x1 + mm(h, p['w2']) + p['b2']
    return _layer_norm(x2, p['g2'], p['be2'])


if __name__ == "__main__":
    B, S, E, H = 2, 16, 32, 4
    F = 4 * E  # FFN hidden dim
    key = jax.random.PRNGKey(0)
    ks = jax.random.split(key, 16)

    def w(k, shape, scale=0.05):
        return (scale * jax.random.normal(k, shape)).astype(jnp.float32)

    x = jax.random.normal(ks[0], (B, S, E), jnp.float32)
    x_pe = jax.random.normal(ks[1], (B, S, E), jnp.float32)

    params = {
        'wq': w(ks[2], (E, E)), 'bq': w(ks[3], (1, E), 0.01),
        'wk': w(ks[4], (E, E)), 'bk': w(ks[5], (1, E), 0.01),
        'wv': w(ks[6], (E, E)), 'bv': w(ks[7], (1, E), 0.01),
        'wo': w(ks[8], (E, E)), 'bo': w(ks[9], (1, E), 0.01),
        'g1': jnp.ones((1, E), jnp.float32), 'be1': jnp.zeros((1, E), jnp.float32),
        'w1': w(ks[10], (E, F)), 'b1': w(ks[11], (1, F), 0.01),
        'alpha': jnp.full((1, 1), 0.25, jnp.float32),   # nn.PReLU default init
        'w2': w(ks[12], (F, E)), 'b2': w(ks[13], (1, E), 0.01),
        'g2': jnp.ones((1, E), jnp.float32), 'be2': jnp.zeros((1, E), jnp.float32),
    }

    # --- f32 MXU path: matches the PyTorch module numerics ---
    out = jax.block_until_ready(dab_detr_encoder_layer(x, x_pe, params, H))
    ref = reference(x, x_pe, params, H)
    assert out.shape == (B, S, E) and out.dtype == jnp.float32
    assert jnp.allclose(out, ref, atol=2e-3, rtol=2e-3), "f32 path mismatch vs JAX reference"

    # --- bf16 MXU-input path (recommended on v6e/v7x), f32 accumulation / statistics ---
    out_bf16 = jax.block_until_ready(
        dab_detr_encoder_layer(x, x_pe, params, H, mxu_dtype=jnp.bfloat16))
    ref_bf16 = reference(x, x_pe, params, H, mxu_dtype=jnp.bfloat16)
    assert jnp.allclose(out_bf16, ref_bf16, atol=2e-2, rtol=2e-2), \
        "bf16 path mismatch vs JAX reference"

    print("KERNEL_OK")
</pallas_src>

<mosaic_0001>
module attributes {stable_mosaic.version = 11 : i64} {
  func.func @encoder_layer_kernel(%arg0: i32, %arg1: memref<1x16x32xf32, #tpu.memory_space<vmem>>, %arg2: memref<1x16x32xf32, #tpu.memory_space<vmem>>, %arg3: memref<32x64xf32, #tpu.memory_space<vmem>>, %arg4: memref<1x64xf32, #tpu.memory_space<vmem>>, %arg5: memref<32x32xf32, #tpu.memory_space<vmem>>, %arg6: memref<1x32xf32, #tpu.memory_space<vmem>>, %arg7: memref<32x32xf32, #tpu.memory_space<vmem>>, %arg8: memref<1x32xf32, #tpu.memory_space<vmem>>, %arg9: memref<1x32xf32, #tpu.memory_space<vmem>>, %arg10: memref<1x32xf32, #tpu.memory_space<vmem>>, %arg11: memref<32x128xf32, #tpu.memory_space<vmem>>, %arg12: memref<1x128xf32, #tpu.memory_space<vmem>>, %arg13: memref<128x32xf32, #tpu.memory_space<vmem>>, %arg14: memref<1x32xf32, #tpu.memory_space<vmem>>, %arg15: memref<1x32xf32, #tpu.memory_space<vmem>>, %arg16: memref<1x32xf32, #tpu.memory_space<vmem>>, %arg17: memref<1x1xf32, #tpu.memory_space<smem>>, %arg18: memref<1x16x32xf32, #tpu.memory_space<vmem>>) attributes {dimension_semantics = [#tpu.dimension_semantics<parallel>], iteration_bounds = array<i64: 2>, scalar_prefetch = 0 : i64, scratch_operands = 0 : i64, tpu.core_type = #tpu.core_type<tc>, window_params = [{transform_indices = @transform_0, window_bounds = array<i64: 1, 16, 32>}, {transform_indices = @transform_1, window_bounds = array<i64: 1, 16, 32>}, {pipeline_mode = #tpu.pipeline_mode<synchronous>, transform_indices = @transform_2, window_bounds = array<i64: 32, 64>}, {pipeline_mode = #tpu.pipeline_mode<synchronous>, transform_indices = @transform_3, window_bounds = array<i64: 1, 64>}, {pipeline_mode = #tpu.pipeline_mode<synchronous>, transform_indices = @transform_4, window_bounds = array<i64: 32, 32>}, {pipeline_mode = #tpu.pipeline_mode<synchronous>, transform_indices = @transform_5, window_bounds = array<i64: 1, 32>}, {pipeline_mode = #tpu.pipeline_mode<synchronous>, transform_indices = @transform_6, window_bounds = array<i64: 32, 32>}, {pipeline_mode = #tpu.pipeline_mode<synchronous>, transform_indices = @transform_7, window_bounds = array<i64: 1, 32>}, {pipeline_mode = #tpu.pipeline_mode<synchronous>, transform_indices = @transform_8, window_bounds = array<i64: 1, 32>}, {pipeline_mode = #tpu.pipeline_mode<synchronous>, transform_indices = @transform_9, window_bounds = array<i64: 1, 32>}, {pipeline_mode = #tpu.pipeline_mode<synchronous>, transform_indices = @transform_10, window_bounds = array<i64: 32, 128>}, {pipeline_mode = #tpu.pipeline_mode<synchronous>, transform_indices = @transform_11, window_bounds = array<i64: 1, 128>}, {pipeline_mode = #tpu.pipeline_mode<synchronous>, transform_indices = @transform_12, window_bounds = array<i64: 128, 32>}, {pipeline_mode = #tpu.pipeline_mode<synchronous>, transform_indices = @transform_13, window_bounds = array<i64: 1, 32>}, {pipeline_mode = #tpu.pipeline_mode<synchronous>, transform_indices = @transform_14, window_bounds = array<i64: 1, 32>}, {pipeline_mode = #tpu.pipeline_mode<synchronous>, transform_indices = @transform_15, window_bounds = array<i64: 1, 32>}, {transform_indices = @transform_16, window_bounds = array<i64: 1, 1>}, {transform_indices = @transform_17, window_bounds = array<i64: 1, 16, 32>}]} {
    %c0 = arith.constant 0 : index
    %c0_0 = arith.constant 0 : index
    %c0_1 = arith.constant 0 : index
    %0 = vector.load %arg1[%c0, %c0_0, %c0_1] : memref<1x16x32xf32, #tpu.memory_space<vmem>>, vector<1x16x32xf32>
    %1 = vector.shape_cast %0 : vector<1x16x32xf32> to vector<16x32xf32>
    %c0_2 = arith.constant 0 : index
    %c0_3 = arith.constant 0 : index
    %c0_4 = arith.constant 0 : index
    %2 = vector.load %arg2[%c0_2, %c0_3, %c0_4] : memref<1x16x32xf32, #tpu.memory_space<vmem>>, vector<1x16x32xf32>
    %3 = vector.shape_cast %2 : vector<1x16x32xf32> to vector<16x32xf32>
    %4 = arith.addf %1, %3 : vector<16x32xf32>
    %c0_5 = arith.constant 0 : index
    %c0_6 = arith.constant 0 : index
    %5 = vector.load %arg3[%c0_5, %c0_6] : memref<32x64xf32, #tpu.memory_space<vmem>>, vector<32x64xf32>
    %cst = arith.constant dense<0.000000e+00> : vector<16x64xf32>
    %6 = tpu.matmul %4, %5, %cst {dimension_numbers = #tpu.dot_dimension_numbers<[1], [0], [0], [1], [0, 0, 1, 1], [], []>} : vector<16x32xf32>, vector<32x64xf32>, vector<16x64xf32> -> vector<16x64xf32>
    %c0_7 = arith.constant 0 : index
    %c0_8 = arith.constant 0 : index
    %7 = vector.load %arg4[%c0_7, %c0_8] : memref<1x64xf32, #tpu.memory_space<vmem>>, vector<1x64xf32>
    %8 = vector.broadcast %7 : vector<1x64xf32> to vector<16x64xf32>
    %9 = arith.addf %6, %8 : vector<16x64xf32>
    %c0_9 = arith.constant 0 : index
    %c0_10 = arith.constant 0 : index
    %10 = vector.load %arg5[%c0_9, %c0_10] : memref<32x32xf32, #tpu.memory_space<vmem>>, vector<32x32xf32>
    %cst_11 = arith.constant dense<0.000000e+00> : vector<16x32xf32>
    %11 = tpu.matmul %1, %10, %cst_11 {dimension_numbers = #tpu.dot_dimension_numbers<[1], [0], [0], [1], [0, 0, 1, 1], [], []>} : vector<16x32xf32>, vector<32x32xf32>, vector<16x32xf32> -> vector<16x32xf32>
    %c0_12 = arith.constant 0 : index
    %c0_13 = arith.constant 0 : index
    %12 = vector.load %arg6[%c0_12, %c0_13] : memref<1x32xf32, #tpu.memory_space<vmem>>, vector<1x32xf32>
    %13 = vector.broadcast %12 : vector<1x32xf32> to vector<16x32xf32>
    %14 = arith.addf %11, %13 : vector<16x32xf32>
    %15 = vector.extract_strided_slice %9 {offsets = [0, 0], sizes = [16, 32], strides = [1, 1]} : vector<16x64xf32> to vector<16x32xf32>
    %16 = vector.extract_strided_slice %9 {offsets = [0, 32], sizes = [16, 32], strides = [1, 1]} : vector<16x64xf32> to vector<16x32xf32>
    %17 = vector.extract_strided_slice %15 {offsets = [0, 0], sizes = [16, 8], strides = [1, 1]} : vector<16x32xf32> to vector<16x8xf32>
    %18 = vector.extract_strided_slice %15 {offsets = [0, 8], sizes = [16, 8], strides = [1, 1]} : vector<16x32xf32> to vector<16x8xf32>
    %19 = vector.extract_strided_slice %15 {offsets = [0, 16], sizes = [16, 8], strides = [1, 1]} : vector<16x32xf32> to vector<16x8xf32>
    %20 = vector.extract_strided_slice %15 {offsets = [0, 24], sizes = [16, 8], strides = [1, 1]} : vector<16x32xf32> to vector<16x8xf32>
    %21 = vector.shape_cast %17 : vector<16x8xf32> to vector<1x16x8xf32>
    %22 = vector.shape_cast %18 : vector<16x8xf32> to vector<1x16x8xf32>
    %23 = vector.shape_cast %19 : vector<16x8xf32> to vector<1x16x8xf32>
    %24 = vector.shape_cast %20 : vector<16x8xf32> to vector<1x16x8xf32>
    %25 = tpu.concatenate %21, %22, %23, %24 in 0 : vector<1x16x8xf32>, vector<1x16x8xf32>, vector<1x16x8xf32>, vector<1x16x8xf32> -> vector<4x16x8xf32>
    %cst_14 = arith.constant 0.353553385 : f32
    %26 = vector.broadcast %cst_14 : f32 to vector<4x16x8xf32>
    %27 = arith.mulf %25, %26 : vector<4x16x8xf32>
    %28 = vector.extract_strided_slice %16 {offsets = [0, 0], sizes = [16, 8], strides = [1, 1]} : vector<16x32xf32> to vector<16x8xf32>
    %29 = vector.extract_strided_slice %16 {offsets = [0, 8], sizes = [16, 8], strides = [1, 1]} : vector<16x32xf32> to vector<16x8xf32>
    %30 = vector.extract_strided_slice %16 {offsets = [0, 16], sizes = [16, 8], strides = [1, 1]} : vector<16x32xf32> to vector<16x8xf32>
    %31 = vector.extract_strided_slice %16 {offsets = [0, 24], sizes = [16, 8], strides = [1, 1]} : vector<16x32xf32> to vector<16x8xf32>
    %32 = vector.shape_cast %28 : vector<16x8xf32> to vector<1x16x8xf32>
    %33 = vector.shape_cast %29 : vector<16x8xf32> to vector<1x16x8xf32>
    %34 = vector.shape_cast %30 : vector<16x8xf32> to vector<1x16x8xf32>
    %35 = vector.shape_cast %31 : vector<16x8xf32> to vector<1x16x8xf32>
    %36 = tpu.concatenate %32, %33, %34, %35 in 0 : vector<1x16x8xf32>, vector<1x16x8xf32>, vector<1x16x8xf32>, vector<1x16x8xf32> -> vector<4x16x8xf32>
    %37 = vector.extract_strided_slice %14 {offsets = [0, 0], sizes = [16, 8], strides = [1, 1]} : vector<16x32xf32> to vector<16x8xf32>
    %38 = vector.extract_strided_slice %14 {offsets = [0, 8], sizes = [16, 8], strides = [1, 1]} : vector<16x32xf32> to vector<16x8xf32>
    %39 = vector.extract_strided_slice %14 {offsets = [0, 16], sizes = [16, 8], strides = [1, 1]} : vector<16x32xf32> to vector<16x8xf32>
    %40 = vector.extract_strided_slice %14 {offsets = [0, 24], sizes = [16, 8], strides = [1, 1]} : vector<16x32xf32> to vector<16x8xf32>
    %41 = vector.shape_cast %37 : vector<16x8xf32> to vector<1x16x8xf32>
    %42 = vector.shape_cast %38 : vector<16x8xf32> to vector<1x16x8xf32>
    %43 = vector.shape_cast %39 : vector<16x8xf32> to vector<1x16x8xf32>
    %44 = vector.shape_cast %40 : vector<16x8xf32> to vector<1x16x8xf32>
    %45 = tpu.concatenate %41, %42, %43, %44 in 0 : vector<1x16x8xf32>, vector<1x16x8xf32>, vector<1x16x8xf32>, vector<1x16x8xf32> -> vector<4x16x8xf32>
    "tpu.trace_start"() <{level = 10 : i32, message = "hqd,hkd->hqk"}> : () -> ()
    %cst_15 = arith.constant dense<0.000000e+00> : vector<4x16x16xf32>
    %46 = tpu.matmul %27, %36, %cst_15 {dimension_numbers = #tpu.dot_dimension_numbers<[2], [2], [1], [1], [0, 0, 0, 1, 1, 1], [0], [0]>} : vector<4x16x8xf32>, vector<4x16x8xf32>, vector<4x16x16xf32> -> vector<4x16x16xf32>
    "tpu.trace_stop"() : () -> ()
    %cst_16 = arith.constant dense<0xFF800000> : vector<4x16xf32>
    %47 = vector.multi_reduction <maximumf>, %46, %cst_16 [2] : vector<4x16x16xf32> to vector<4x16xf32>
    %48 = vector.shape_cast %47 : vector<4x16xf32> to vector<4x16x1xf32>
    %49 = vector.broadcast %48 : vector<4x16x1xf32> to vector<4x16x16xf32>
    %50 = arith.subf %46, %49 : vector<4x16x16xf32>
    %51 = math.exp %50 : vector<4x16x16xf32>
    %cst_17 = arith.constant dense<0.000000e+00> : vector<4x16xf32>
    %52 = vector.multi_reduction <add>, %51, %cst_17 [2] : vector<4x16x16xf32> to vector<4x16xf32>
    %53 = vector.shape_cast %52 : vector<4x16xf32> to vector<4x16x1xf32>
    %54 = tpu.reciprocal %53 {approx = true} : vector<4x16x1xf32> -> vector<4x16x1xf32>
    %55 = vector.broadcast %54 : vector<4x16x1xf32> to vector<4x16x16xf32>
    %56 = arith.mulf %51, %55 : vector<4x16x16xf32>
    "tpu.trace_start"() <{level = 10 : i32, message = "hqk,hkd->hqd"}> : () -> ()
    %cst_18 = arith.constant dense<0.000000e+00> : vector<4x16x8xf32>
    %57 = tpu.matmul %56, %45, %cst_18 {dimension_numbers = #tpu.dot_dimension_numbers<[2], [1], [1], [2], [0, 0, 0, 1, 1, 2], [0], [0]>} : vector<4x16x16xf32>, vector<4x16x8xf32>, vector<4x16x8xf32> -> vector<4x16x8xf32>
    "tpu.trace_stop"() : () -> ()
    %58 = vector.extract_strided_slice %57 {offsets = [0, 0, 0], sizes = [1, 16, 8], strides = [1, 1, 1]} : vector<4x16x8xf32> to vector<1x16x8xf32>
    %59 = vector.shape_cast %58 : vector<1x16x8xf32> to vector<16x8xf32>
    %60 = vector.extract_strided_slice %57 {offsets = [1, 0, 0], sizes = [1, 16, 8], strides = [1, 1, 1]} : vector<4x16x8xf32> to vector<1x16x8xf32>
    %61 = vector.shape_cast %60 : vector<1x16x8xf32> to vector<16x8xf32>
    %62 = vector.extract_strided_slice %57 {offsets = [2, 0, 0], sizes = [1, 16, 8], strides = [1, 1, 1]} : vector<4x16x8xf32> to vector<1x16x8xf32>
    %63 = vector.shape_cast %62 : vector<1x16x8xf32> to vector<16x8xf32>
    %64 = vector.extract_strided_slice %57 {offsets = [3, 0, 0], sizes = [1, 16, 8], strides = [1, 1, 1]} : vector<4x16x8xf32> to vector<1x16x8xf32>
    %65 = vector.shape_cast %64 : vector<1x16x8xf32> to vector<16x8xf32>
    %66 = tpu.concatenate %59, %61, %63, %65 in 1 : vector<16x8xf32>, vector<16x8xf32>, vector<16x8xf32>, vector<16x8xf32> -> vector<16x32xf32>
    %c0_19 = arith.constant 0 : index
    %c0_20 = arith.constant 0 : index
    %67 = vector.load %arg7[%c0_19, %c0_20] : memref<32x32xf32, #tpu.memory_space<vmem>>, vector<32x32xf32>
    %cst_21 = arith.constant dense<0.000000e+00> : vector<16x32xf32>
    %68 = tpu.matmul %66, %67, %cst_21 {dimension_numbers = #tpu.dot_dimension_numbers<[1], [0], [0], [1], [0, 0, 1, 1], [], []>} : vector<16x32xf32>, vector<32x32xf32>, vector<16x32xf32> -> vector<16x32xf32>
    %c0_22 = arith.constant 0 : index
    %c0_23 = arith.constant 0 : index
    %69 = vector.load %arg8[%c0_22, %c0_23] : memref<1x32xf32, #tpu.memory_space<vmem>>, vector<1x32xf32>
    %70 = vector.broadcast %69 : vector<1x32xf32> to vector<16x32xf32>
    %71 = arith.addf %68, %70 : vector<16x32xf32>
    %72 = arith.addf %1, %71 : vector<16x32xf32>
    %c0_24 = arith.constant 0 : index
    %c0_25 = arith.constant 0 : index
    %73 = vector.load %arg9[%c0_24, %c0_25] : memref<1x32xf32, #tpu.memory_space<vmem>>, vector<1x32xf32>
    %c0_26 = arith.constant 0 : index
    %c0_27 = arith.constant 0 : index
    %74 = vector.load %arg10[%c0_26, %c0_27] : memref<1x32xf32, #tpu.memory_space<vmem>>, vector<1x32xf32>
    %cst_28 = arith.constant dense<0.000000e+00> : vector<16xf32>
    %75 = vector.multi_reduction <add>, %72, %cst_28 [1] : vector<16x32xf32> to vector<16xf32>
    %76 = vector.shape_cast %75 : vector<16xf32> to vector<16x1xf32>
    %cst_29 = arith.constant 3.200000e+01 : f32
    %77 = vector.broadcast %cst_29 : f32 to vector<16x1xf32>
    %78 = arith.divf %76, %77 : vector<16x1xf32>
    %79 = vector.broadcast %78 : vector<16x1xf32> to vector<16x32xf32>
    %80 = arith.subf %72, %79 : vector<16x32xf32>
    %81 = arith.mulf %80, %80 : vector<16x32xf32>
    %cst_30 = arith.constant dense<0.000000e+00> : vector<16xf32>
    %82 = vector.multi_reduction <add>, %81, %cst_30 [1] : vector<16x32xf32> to vector<16xf32>
    %83 = vector.shape_cast %82 : vector<16xf32> to vector<16x1xf32>
    %cst_31 = arith.constant 3.200000e+01 : f32
    %84 = vector.broadcast %cst_31 : f32 to vector<16x1xf32>
    %85 = arith.divf %83, %84 : vector<16x1xf32>
    %86 = vector.broadcast %78 : vector<16x1xf32> to vector<16x32xf32>
    %87 = arith.subf %72, %86 : vector<16x32xf32>
    %cst_32 = arith.constant 9.99999974E-6 : f32
    %88 = vector.broadcast %cst_32 : f32 to vector<16x1xf32>
    %89 = arith.addf %85, %88 : vector<16x1xf32>
    %90 = math.rsqrt %89 : vector<16x1xf32>
    %91 = vector.broadcast %90 : vector<16x1xf32> to vector<16x32xf32>
    %92 = arith.mulf %87, %91 : vector<16x32xf32>
    %93 = vector.broadcast %73 : vector<1x32xf32> to vector<16x32xf32>
    %94 = arith.mulf %92, %93 : vector<16x32xf32>
    %95 = vector.broadcast %74 : vector<1x32xf32> to vector<16x32xf32>
    %96 = arith.addf %94, %95 : vector<16x32xf32>
    %c0_33 = arith.constant 0 : index
    %c0_34 = arith.constant 0 : index
    %97 = vector.load %arg11[%c0_33, %c0_34] : memref<32x128xf32, #tpu.memory_space<vmem>>, vector<32x128xf32>
    %cst_35 = arith.constant dense<0.000000e+00> : vector<16x128xf32>
    %98 = tpu.matmul %96, %97, %cst_35 {dimension_numbers = #tpu.dot_dimension_numbers<[1], [0], [0], [1], [0, 0, 1, 1], [], []>} : vector<16x32xf32>, vector<32x128xf32>, vector<16x128xf32> -> vector<16x128xf32>
    %c0_36 = arith.constant 0 : index
    %c0_37 = arith.constant 0 : index
    %99 = vector.load %arg12[%c0_36, %c0_37] : memref<1x128xf32, #tpu.memory_space<vmem>>, vector<1x128xf32>
    %100 = vector.broadcast %99 : vector<1x128xf32> to vector<16x128xf32>
    %101 = arith.addf %98, %100 : vector<16x128xf32>
    %c0_38 = arith.constant 0 : index
    %c0_39 = arith.constant 0 : index
    %102 = memref.load %arg17[%c0_38, %c0_39] : memref<1x1xf32, #tpu.memory_space<smem>>
    %cst_40 = arith.constant 0.000000e+00 : f32
    %103 = vector.broadcast %cst_40 : f32 to vector<16x128xf32>
    %104 = arith.cmpf oge, %101, %103 : vector<16x128xf32>
    %105 = vector.broadcast %102 : f32 to vector<16x128xf32>
    %106 = arith.mulf %105, %101 : vector<16x128xf32>
    %107 = arith.select %104, %101, %106 : vector<16x128xi1>, vector<16x128xf32>
    %c0_41 = arith.constant 0 : index
    %c0_42 = arith.constant 0 : index
    %108 = vector.load %arg13[%c0_41, %c0_42] : memref<128x32xf32, #tpu.memory_space<vmem>>, vector<128x32xf32>
    %cst_43 = arith.constant dense<0.000000e+00> : vector<16x32xf32>
    %109 = tpu.matmul %107, %108, %cst_43 {dimension_numbers = #tpu.dot_dimension_numbers<[1], [0], [0], [1], [0, 0, 1, 1], [], []>} : vector<16x128xf32>, vector<128x32xf32>, vector<16x32xf32> -> vector<16x32xf32>
    %c0_44 = arith.constant 0 : index
    %c0_45 = arith.constant 0 : index
    %110 = vector.load %arg14[%c0_44, %c0_45] : memref<1x32xf32, #tpu.memory_space<vmem>>, vector<1x32xf32>
    %111 = vector.broadcast %110 : vector<1x32xf32> to vector<16x32xf32>
    %112 = arith.addf %109, %111 : vector<16x32xf32>
    %113 = arith.addf %96, %112 : vector<16x32xf32>
    %c0_46 = arith.constant 0 : index
    %c0_47 = arith.constant 0 : index
    %114 = vector.load %arg15[%c0_46, %c0_47] : memref<1x32xf32, #tpu.memory_space<vmem>>, vector<1x32xf32>
    %c0_48 = arith.constant 0 : index
    %c0_49 = arith.constant 0 : index
    %115 = vector.load %arg16[%c0_48, %c0_49] : memref<1x32xf32, #tpu.memory_space<vmem>>, vector<1x32xf32>
    %cst_50 = arith.constant dense<0.000000e+00> : vector<16xf32>
    %116 = vector.multi_reduction <add>, %113, %cst_50 [1] : vector<16x32xf32> to vector<16xf32>
    %117 = vector.shape_cast %116 : vector<16xf32> to vector<16x1xf32>
    %cst_51 = arith.constant 3.200000e+01 : f32
    %118 = vector.broadcast %cst_51 : f32 to vector<16x1xf32>
    %119 = arith.divf %117, %118 : vector<16x1xf32>
    %120 = vector.broadcast %119 : vector<16x1xf32> to vector<16x32xf32>
    %121 = arith.subf %113, %120 : vector<16x32xf32>
    %122 = arith.mulf %121, %121 : vector<16x32xf32>
    %cst_52 = arith.constant dense<0.000000e+00> : vector<16xf32>
    %123 = vector.multi_reduction <add>, %122, %cst_52 [1] : vector<16x32xf32> to vector<16xf32>
    %124 = vector.shape_cast %123 : vector<16xf32> to vector<16x1xf32>
    %cst_53 = arith.constant 3.200000e+01 : f32
    %125 = vector.broadcast %cst_53 : f32 to vector<16x1xf32>
    %126 = arith.divf %124, %125 : vector<16x1xf32>
    %127 = vector.broadcast %119 : vector<16x1xf32> to vector<16x32xf32>
    %128 = arith.subf %113, %127 : vector<16x32xf32>
    %cst_54 = arith.constant 9.99999974E-6 : f32
    %129 = vector.broadcast %cst_54 : f32 to vector<16x1xf32>
    %130 = arith.addf %126, %129 : vector<16x1xf32>
    %131 = math.rsqrt %130 : vector<16x1xf32>
    %132 = vector.broadcast %131 : vector<16x1xf32> to vector<16x32xf32>
    %133 = arith.mulf %128, %132 : vector<16x32xf32>
    %134 = vector.broadcast %114 : vector<1x32xf32> to vector<16x32xf32>
    %135 = arith.mulf %133, %134 : vector<16x32xf32>
    %136 = vector.broadcast %115 : vector<1x32xf32> to vector<16x32xf32>
    %137 = arith.addf %135, %136 : vector<16x32xf32>
    %c0_55 = arith.constant 0 : index
    %c0_56 = arith.constant 0 : index
    %c0_57 = arith.constant 0 : index
    %138 = vector.load %arg18[%c0_55, %c0_56, %c0_57] : memref<1x16x32xf32, #tpu.memory_space<vmem>>, vector<1x16x32xf32>
    %139 = vector.shape_cast %138 : vector<1x16x32xf32> to vector<16x32xf32>
    %140 = vector.shape_cast %137 : vector<16x32xf32> to vector<1x16x32xf32>
    tpu.vector_store %arg18[%c0_55, %c0_56, %c0_57], %140 {strides = array<i32>} : memref<1x16x32xf32, #tpu.memory_space<vmem>>, vector<1x16x32xf32>,
    return
  }
  func.func @transform_0(%arg0: i32) -> (i32, i32, i32) {
    %c0_i32 = arith.constant 0 : i32
    %c0_i32_0 = arith.constant 0 : i32
    %c0_i32_1 = arith.constant 0 : i32
    return %arg0, %c0_i32, %c0_i32_0 : i32, i32, i32
  }
  func.func @transform_1(%arg0: i32) -> (i32, i32, i32) {
    %c0_i32 = arith.constant 0 : i32
    %c0_i32_0 = arith.constant 0 : i32
    %c0_i32_1 = arith.constant 0 : i32
    return %arg0, %c0_i32, %c0_i32_0 : i32, i32, i32
  }
  func.func @transform_2(%arg0: i32) -> (i32, i32) {
    %c0_i32 = arith.constant 0 : i32
    %c0_i32_0 = arith.constant 0 : i32
    %c0_i32_1 = arith.constant 0 : i32
    return %c0_i32, %c0_i32_0 : i32, i32
  }
  func.func @transform_3(%arg0: i32) -> (i32, i32) {
    %c0_i32 = arith.constant 0 : i32
    %c0_i32_0 = arith.constant 0 : i32
    %c0_i32_1 = arith.constant 0 : i32
    return %c0_i32, %c0_i32_0 : i32, i32
  }
  func.func @transform_4(%arg0: i32) -> (i32, i32) {
    %c0_i32 = arith.constant 0 : i32
    %c0_i32_0 = arith.constant 0 : i32
    %c0_i32_1 = arith.constant 0 : i32
    return %c0_i32, %c0_i32_0 : i32, i32
  }
  func.func @transform_5(%arg0: i32) -> (i32, i32) {
    %c0_i32 = arith.constant 0 : i32
    %c0_i32_0 = arith.constant 0 : i32
    %c0_i32_1 = arith.constant 0 : i32
    return %c0_i32, %c0_i32_0 : i32, i32
  }
  func.func @transform_6(%arg0: i32) -> (i32, i32) {
    %c0_i32 = arith.constant 0 : i32
    %c0_i32_0 = arith.constant 0 : i32
    %c0_i32_1 = arith.constant 0 : i32
    return %c0_i32, %c0_i32_0 : i32, i32
  }
  func.func @transform_7(%arg0: i32) -> (i32, i32) {
    %c0_i32 = arith.constant 0 : i32
    %c0_i32_0 = arith.constant 0 : i32
    %c0_i32_1 = arith.constant 0 : i32
    return %c0_i32, %c0_i32_0 : i32, i32
  }
  func.func @transform_8(%arg0: i32) -> (i32, i32) {
    %c0_i32 = arith.constant 0 : i32
    %c0_i32_0 = arith.constant 0 : i32
    %c0_i32_1 = arith.constant 0 : i32
    return %c0_i32, %c0_i32_0 : i32, i32
  }
  func.func @transform_9(%arg0: i32) -> (i32, i32) {
    %c0_i32 = arith.constant 0 : i32
    %c0_i32_0 = arith.constant 0 : i32
    %c0_i32_1 = arith.constant 0 : i32
    return %c0_i32, %c0_i32_0 : i32, i32
  }
  func.func @transform_10(%arg0: i32) -> (i32, i32) {
    %c0_i32 = arith.constant 0 : i32
    %c0_i32_0 = arith.constant 0 : i32
    %c0_i32_1 = arith.constant 0 : i32
    return %c0_i32, %c0_i32_0 : i32, i32
  }
  func.func @transform_11(%arg0: i32) -> (i32, i32) {
    %c0_i32 = arith.constant 0 : i32
    %c0_i32_0 = arith.constant 0 : i32
    %c0_i32_1 = arith.constant 0 : i32
    return %c0_i32, %c0_i32_0 : i32, i32
  }
  func.func @transform_12(%arg0: i32) -> (i32, i32) {
    %c0_i32 = arith.constant 0 : i32
    %c0_i32_0 = arith.constant 0 : i32
    %c0_i32_1 = arith.constant 0 : i32
    return %c0_i32, %c0_i32_0 : i32, i32
  }
  func.func @transform_13(%arg0: i32) -> (i32, i32) {
    %c0_i32 = arith.constant 0 : i32
    %c0_i32_0 = arith.constant 0 : i32
    %c0_i32_1 = arith.constant 0 : i32
    return %c0_i32, %c0_i32_0 : i32, i32
  }
  func.func @transform_14(%arg0: i32) -> (i32, i32) {
    %c0_i32 = arith.constant 0 : i32
    %c0_i32_0 = arith.constant 0 : i32
    %c0_i32_1 = arith.constant 0 : i32
    return %c0_i32, %c0_i32_0 : i32, i32
  }
  func.func @transform_15(%arg0: i32) -> (i32, i32) {
    %c0_i32 = arith.constant 0 : i32
    %c0_i32_0 = arith.constant 0 : i32
    %c0_i32_1 = arith.constant 0 : i32
    return %c0_i32, %c0_i32_0 : i32, i32
  }
  func.func @transform_16(%arg0: i32) -> (i32, i32) {
    %c0_i32 = arith.constant 0 : i32
    %c0_i32_0 = arith.constant 0 : i32
    %c0_i32_1 = arith.constant 0 : i32
    return %c0_i32, %c0_i32_0 : i32, i32
  }
  func.func @transform_17(%arg0: i32) -> (i32, i32, i32) {
    %c0_i32 = arith.constant 0 : i32
    %c0_i32_0 = arith.constant 0 : i32
    %c0_i32_1 = arith.constant 0 : i32
    return %arg0, %c0_i32, %c0_i32_0 : i32, i32, i32
  }
}

</mosaic_0001>

<llo_original>
// kernel: tpu_custom_call.1
$region0: #{tpu_custom_call.1}
  #allocation0 [shape = 'u32[]', space=smem, size = 0x4, offset = 0x4, fixed_abs, tag = 'smem constant byte address 0x4 - core index']
  #allocation1 [shape = 'u32[144,128]{1,0:T(1,128)}', space=vmem, size = 0x12000, scoped, tag = 'internal scratch']
  #allocation2 [shape = 'f32[1,1]{1,0:T(1,128)S(6)}', space=smem, size = 0x200, scoped, tag = 'scoped memory for tpu_custom_call.1']
  %s0 = inlined_call_operand.vmem [shape: f32[2,16,32], index: 0, kind: input, shape index: {}]
  %s1 = inlined_call_operand.vmem [shape: f32[2,16,32], index: 1, kind: input, shape index: {}]
  %s2 = inlined_call_operand.vmem [shape: f32[32,64], index: 2, kind: input, shape index: {}]
  %s3 = inlined_call_operand.vmem [shape: f32[1,64], index: 3, kind: input, shape index: {}]
  %s4 = inlined_call_operand.vmem [shape: f32[32,32], index: 4, kind: input, shape index: {}]
  %s5 = inlined_call_operand.vmem [shape: f32[1,32], index: 5, kind: input, shape index: {}]
  %s6 = inlined_call_operand.vmem [shape: f32[32,32], index: 6, kind: input, shape index: {}]
  %s7 = inlined_call_operand.vmem [shape: f32[1,32], index: 7, kind: input, shape index: {}]
  %s8 = inlined_call_operand.vmem [shape: f32[1,32], index: 8, kind: input, shape index: {}]
  %s9 = inlined_call_operand.vmem [shape: f32[1,32], index: 9, kind: input, shape index: {}]
  %s10 = inlined_call_operand.hbm [shape: f32[32,128], index: 10, kind: input, shape index: {}]
  %s11 = inlined_call_operand.vmem [shape: f32[1,128], index: 11, kind: input, shape index: {}]
  %s12 = inlined_call_operand.vmem [shape: f32[128,32], index: 12, kind: input, shape index: {}]
  %s13 = inlined_call_operand.vmem [shape: f32[1,32], index: 13, kind: input, shape index: {}]
  %s14 = inlined_call_operand.vmem [shape: f32[1,32], index: 14, kind: input, shape index: {}]
  %s15 = inlined_call_operand.vmem [shape: f32[1,32], index: 15, kind: input, shape index: {}]
  %s16 = inlined_call_operand.<no memory space> [shape: f32[1,1], index: 16, kind: input, shape index: {}]
  %s17 = inlined_call_operand.hbm [shape: f32[2,16,32], index: 17, kind: output, shape index: {}]
  %s18 = sld [smem:[#allocation0]]
  $region105: #{tpu_custom_call.1} parent=0
    _
  %s20 = ssub.s32 1, %s18
  %s21 = scalar_select 0, %s20, %s18
  %22 = sst [smem:[#allocation2]] %s16
  $region1: #{tpu_custom_call.1} parent=0
    #allocation3 [shape = 'u8[16384]{0}', space=vmem, size = 0x4000, scoped, tag = 'input window, operand 10, single buffered']
    #allocation4 [shape = 's32[2]{0}', space=sflag, size = 0x8, scoped, tag = 'scoped memory for tpu_custom_call.1']
    #allocation5 [shape = 's32[2]{0}', space=sflag, size = 0x8, scoped, tag = 'scoped memory for tpu_custom_call.1']
    #allocation6 [shape = 'u8[16384]{0}', space=vmem, size = 0x4000, scoped, tag = 'output window, operand 0']
    %23 = vsyncpa [#allocation4], 0
    %24 = vsyncpa [#allocation5], 0
    %s25 = scalar_lea.sflag [#allocation5], 1
    %26 = vsyncpa %s25, 0
    loop: start=0, step=1, limit=4
    $region2: #{tpu_custom_call.1} parent=1 // loop_pre_header
      _
    $region3: #{tpu_custom_call.1} parent=1 // loop_header
      %s28 = sphi 0, %s32
      %p29 = scmp.ge.s32.totalorder %s28, 4
      %s38 = sphi 0, %s40
      %s41 = sphi 0, %s38
      %s42 = sphi 0, %s41
      %s58 = sphi 0, %s42
      %s64 = sphi 0, %s66
      %s67 = sphi 0, %s64
      %s68 = sphi 0, %s67
      %s84 = sphi 0, %s68
      %s88 = sphi 0, %s88
      %s90 = sphi 0, %s88
      %s91 = sphi 0, %s90
      %s105 = sphi 0, %s91
      %s109 = sphi 0, %s109
      %s111 = sphi 0, %s109
      %s112 = sphi 0, %s111
      %s126 = sphi 0, %s112
      %s130 = sphi 0, %s130
      %s132 = sphi 0, %s130
      %s133 = sphi 0, %s132
      %s147 = sphi 0, %s133
      %s151 = sphi 0, %s151
      %s153 = sphi 0, %s151
      %s154 = sphi 0, %s153
      %s168 = sphi 0, %s154
      %s172 = sphi 0, %s172
      %s174 = sphi 0, %s172
      %s175 = sphi 0, %s174
      %s189 = sphi 0, %s175
      %s193 = sphi 0, %s193
      %s195 = sphi 0, %s193
      %s196 = sphi 0, %s195
      %s210 = sphi 0, %s196
      %s214 = sphi 0, %s214
      %s216 = sphi 0, %s214
      %s217 = sphi 0, %s216
      %s231 = sphi 0, %s217
      %s235 = sphi 0, %s235
      %s237 = sphi 0, %s235
      %s238 = sphi 0, %s237
      %s252 = sphi 0, %s238
      %s256 = sphi 0, %s256
      %s258 = sphi 0, %s256
      %s259 = sphi 0, %s258
      %s273 = sphi 0, %s259
      %s277 = sphi 0, %s277
      %s279 = sphi 0, %s277
      %s280 = sphi 0, %s279
      %s294 = sphi 0, %s280
      %s298 = sphi 0, %s298
      %s300 = sphi 0, %s298
      %s301 = sphi 0, %s300
      %s315 = sphi 0, %s301
      %s319 = sphi 0, %s319
      %s321 = sphi 0, %s319
      %s322 = sphi 0, %s321
      %s336 = sphi 0, %s322
      %s340 = sphi 0, %s340
      %s342 = sphi 0, %s340
      %s343 = sphi 0, %s342
      %s357 = sphi 0, %s343
      %s361 = sphi 0, %s361
      %s363 = sphi 0, %s361
      %s364 = sphi 0, %s363
      %s378 = sphi 0, %s364
      %s382 = sphi 0, %s382
      %s384 = sphi 0, %s382
      %s385 = sphi 0, %s384
      %s399 = sphi 0, %s385
      %s405 = sphi 0, %s407
      %s408 = sphi 0, %s405
      %s409 = sphi 0, %s408
      %s425 = sphi 0, %s409
    $region4: #{tpu_custom_call.1} parent=1 // loop_header_branch
      %31 = sbr.rel (%p29) target = $region8
    $region5: #{tpu_custom_call.1} parent=1 // loop_body
      %s33 = ssub.s32 %s28, 1
      %s34 = ssub.s32 %s28, 2
      %s35 = sadd.s32 %s28, 1
      %s36 = ssub.s32 %s28, %s35
      %p37 = scmp.eq.s32.totalorder %s36, 0
      %s39 = sadd.s32 %s38, 1
      %s40 = scalar_select %p37, %s38, %s39
      %p43 = pneg %p37
      %p44 = scmp.eq.s32.totalorder %s28, 1
      %p45 = por %p43, %p44
      %p46 = scmp.ne.s32.totalorder %s38, %s41
      %p47 = scmp.eq.s32.totalorder %s28, 0
      %p48 = por %p46, %p47
      %p49 = scmp.ne.s32.totalorder %s38, %s41
      %p50 = scmp.eq.s32.totalorder %s33, 1
      %p51 = por %p49, %p50
      %p52 = scmp.ne.s32.totalorder %s41, %s42
      %p53 = scmp.eq.s32.totalorder %s33, 0
      %p54 = por %p52, %p53
      %p55 = scmp.ne.s32.totalorder %s41, %s42
      %p56 = scmp.eq.s32.totalorder %s34, 1
      %p57 = por %p55, %p56
      %p59 = scmp.ne.s32.totalorder %s42, %s58
      %p60 = scmp.eq.s32.totalorder %s34, 0
      %p61 = por %p59, %p60
      %s62 = ssub.s32 %s28, %s35
      %p63 = scmp.eq.s32.totalorder %s62, 0
      %s65 = sadd.s32 %s64, 1
      %s66 = scalar_select %p63, %s64, %s65
      %p69 = pneg %p63
      %p70 = scmp.eq.s32.totalorder %s28, 1
      %p71 = por %p69, %p70
      %p72 = scmp.ne.s32.totalorder %s64, %s67
      %p73 = scmp.eq.s32.totalorder %s28, 0
      %p74 = por %p72, %p73
      %p75 = scmp.ne.s32.totalorder %s64, %s67
      %p76 = scmp.eq.s32.totalorder %s33, 1
      %p77 = por %p75, %p76
      %p78 = scmp.ne.s32.totalorder %s67, %s68
      %p79 = scmp.eq.s32.totalorder %s33, 0
      %p80 = por %p78, %p79
      %p81 = scmp.ne.s32.totalorder %s67, %s68
      %p82 = scmp.eq.s32.totalorder %s34, 1
      %p83 = por %p81, %p82
      %p85 = scmp.ne.s32.totalorder %s68, %s84
      %p86 = scmp.eq.s32.totalorder %s34, 0
      %p87 = por %p85, %p86
      %s89 = sadd.s32 %s88, 1
      %p92 = scmp.eq.s32.totalorder %s28, 1
      %p93 = scmp.ne.s32.totalorder %s88, %s90
      %p94 = scmp.eq.s32.totalorder %s28, 0
      %p95 = por %p93, %p94
      %p96 = scmp.ne.s32.totalorder %s88, %s90
      %p97 = scmp.eq.s32.totalorder %s33, 1
      %p98 = por %p96, %p97
      %p99 = scmp.ne.s32.totalorder %s90, %s91
      %p100 = scmp.eq.s32.totalorder %s33, 0
      %p101 = por %p99, %p100
      %p102 = scmp.ne.s32.totalorder %s90, %s91
      %p103 = scmp.eq.s32.totalorder %s34, 1
      %p104 = por %p102, %p103
      %p106 = scmp.ne.s32.totalorder %s91, %s105
      %p107 = scmp.eq.s32.totalorder %s34, 0
      %p108 = por %p106, %p107
      %s110 = sadd.s32 %s109, 1
      %p113 = scmp.eq.s32.totalorder %s28, 1
      %p114 = scmp.ne.s32.totalorder %s109, %s111
      %p115 = scmp.eq.s32.totalorder %s28, 0
      %p116 = por %p114, %p115
      %p117 = scmp.ne.s32.totalorder %s109, %s111
      %p118 = scmp.eq.s32.totalorder %s33, 1
      %p119 = por %p117, %p118
      %p120 = scmp.ne.s32.totalorder %s111, %s112
      %p121 = scmp.eq.s32.totalorder %s33, 0
      %p122 = por %p120, %p121
      %p123 = scmp.ne.s32.totalorder %s111, %s112
      %p124 = scmp.eq.s32.totalorder %s34, 1
      %p125 = por %p123, %p124
      %p127 = scmp.ne.s32.totalorder %s112, %s126
      %p128 = scmp.eq.s32.totalorder %s34, 0
      %p129 = por %p127, %p128
      %s131 = sadd.s32 %s130, 1
      %p134 = scmp.eq.s32.totalorder %s28, 1
      %p135 = scmp.ne.s32.totalorder %s130, %s132
      %p136 = scmp.eq.s32.totalorder %s28, 0
      %p137 = por %p135, %p136
      %p138 = scmp.ne.s32.totalorder %s130, %s132
      %p139 = scmp.eq.s32.totalorder %s33, 1
      %p140 = por %p138, %p139
      %p141 = scmp.ne.s32.totalorder %s132, %s133
      %p142 = scmp.eq.s32.totalorder %s33, 0
      %p143 = por %p141, %p142
      %p144 = scmp.ne.s32.totalorder %s132, %s133
      %p145 = scmp.eq.s32.totalorder %s34, 1
      %p146 = por %p144, %p145
      %p148 = scmp.ne.s32.totalorder %s133, %s147
      %p149 = scmp.eq.s32.totalorder %s34, 0
      %p150 = por %p148, %p149
      %s152 = sadd.s32 %s151, 1
      %p155 = scmp.eq.s32.totalorder %s28, 1
      %p156 = scmp.ne.s32.totalorder %s151, %s153
      %p157 = scmp.eq.s32.totalorder %s28, 0
      %p158 = por %p156, %p157
      %p159 = scmp.ne.s32.totalorder %s151, %s153
      %p160 = scmp.eq.s32.totalorder %s33, 1
      %p161 = por %p159, %p160
      %p162 = scmp.ne.s32.totalorder %s153, %s154
      %p163 = scmp.eq.s32.totalorder %s33, 0
      %p164 = por %p162, %p163
      %p165 = scmp.ne.s32.totalorder %s153, %s154
      %p166 = scmp.eq.s32.totalorder %s34, 1
      %p167 = por %p165, %p166
      %p169 = scmp.ne.s32.totalorder %s154, %s168
      %p170 = scmp.eq.s32.totalorder %s34, 0
      %p171 = por %p169, %p170
      %s173 = sadd.s32 %s172, 1
      %p176 = scmp.eq.s32.totalorder %s28, 1
      %p177 = scmp.ne.s32.totalorder %s172, %s174
      %p178 = scmp.eq.s32.totalorder %s28, 0
      %p179 = por %p177, %p178
      %p180 = scmp.ne.s32.totalorder %s172, %s174
      %p181 = scmp.eq.s32.totalorder %s33, 1
      %p182 = por %p180, %p181
      %p183 = scmp.ne.s32.totalorder %s174, %s175
      %p184 = scmp.eq.s32.totalorder %s33, 0
      %p185 = por %p183, %p184
      %p186 = scmp.ne.s32.totalorder %s174, %s175
      %p187 = scmp.eq.s32.totalorder %s34, 1
      %p188 = por %p186, %p187
      %p190 = scmp.ne.s32.totalorder %s175, %s189
      %p191 = scmp.eq.s32.totalorder %s34, 0
      %p192 = por %p190, %p191
      %s194 = sadd.s32 %s193, 1
      %p197 = scmp.eq.s32.totalorder %s28, 1
      %p198 = scmp.ne.s32.totalorder %s193, %s195
      %p199 = scmp.eq.s32.totalorder %s28, 0
      %p200 = por %p198, %p199
      %p201 = scmp.ne.s32.totalorder %s193, %s195
      %p202 = scmp.eq.s32.totalorder %s33, 1
      %p203 = por %p201, %p202
      %p204 = scmp.ne.s32.totalorder %s195, %s196
      %p205 = scmp.eq.s32.totalorder %s33, 0
      %p206 = por %p204, %p205
      %p207 = scmp.ne.s32.totalorder %s195, %s196
      %p208 = scmp.eq.s32.totalorder %s34, 1
      %p209 = por %p207, %p208
      %p211 = scmp.ne.s32.totalorder %s196, %s210
      %p212 = scmp.eq.s32.totalorder %s34, 0
      %p213 = por %p211, %p212
      %s215 = sadd.s32 %s214, 1
      %p218 = scmp.eq.s32.totalorder %s28, 1
      %p219 = scmp.ne.s32.totalorder %s214, %s216
      %p220 = scmp.eq.s32.totalorder %s28, 0
      %p221 = por %p219, %p220
      %p222 = scmp.ne.s32.totalorder %s214, %s216
      %p223 = scmp.eq.s32.totalorder %s33, 1
      %p224 = por %p222, %p223
      %p225 = scmp.ne.s32.totalorder %s216, %s217
      %p226 = scmp.eq.s32.totalorder %s33, 0
      %p227 = por %p225, %p226
      %p228 = scmp.ne.s32.totalorder %s216, %s217
      %p229 = scmp.eq.s32.totalorder %s34, 1
      %p230 = por %p228, %p229
      %p232 = scmp.ne.s32.totalorder %s217, %s231
      %p233 = scmp.eq.s32.totalorder %s34, 0
      %p234 = por %p232, %p233
      %s236 = sadd.s32 %s235, 1
      %p239 = scmp.eq.s32.totalorder %s28, 1
      %p240 = scmp.ne.s32.totalorder %s235, %s237
      %p241 = scmp.eq.s32.totalorder %s28, 0
      %p242 = por %p240, %p241
      %p243 = scmp.ne.s32.totalorder %s235, %s237
      %p244 = scmp.eq.s32.totalorder %s33, 1
      %p245 = por %p243, %p244
      %p246 = scmp.ne.s32.totalorder %s237, %s238
      %p247 = scmp.eq.s32.totalorder %s33, 0
      %p248 = por %p246, %p247
      %p249 = scmp.ne.s32.totalorder %s237, %s238
      %p250 = scmp.eq.s32.totalorder %s34, 1
      %p251 = por %p249, %p250
      %p253 = scmp.ne.s32.totalorder %s238, %s252
      %p254 = scmp.eq.s32.totalorder %s34, 0
      %p255 = por %p253, %p254
      %s257 = sadd.s32 %s256, 1
      %p260 = scmp.eq.s32.totalorder %s28, 1
      %p261 = scmp.ne.s32.totalorder %s256, %s258
      %p262 = scmp.eq.s32.totalorder %s28, 0
      %p263 = por %p261, %p262
      %p264 = scmp.ne.s32.totalorder %s256, %s258
      %p265 = scmp.eq.s32.totalorder %s33, 1
      %p266 = por %p264, %p265
      %p267 = scmp.ne.s32.totalorder %s258, %s259
      %p268 = scmp.eq.s32.totalorder %s33, 0
      %p269 = por %p267, %p268
      %p270 = scmp.ne.s32.totalorder %s258, %s259
      %p271 = scmp.eq.s32.totalorder %s34, 1
      %p272 = por %p270, %p271
      %p274 = scmp.ne.s32.totalorder %s259, %s273
      %p275 = scmp.eq.s32.totalorder %s34, 0
      %p276 = por %p274, %p275
      %s278 = sadd.s32 %s277, 1
      %p281 = scmp.eq.s32.totalorder %s28, 1
      %p282 = scmp.ne.s32.totalorder %s277, %s279
      %p283 = scmp.eq.s32.totalorder %s28, 0
      %p284 = por %p282, %p283
      %p285 = scmp.ne.s32.totalorder %s277, %s279
      %p286 = scmp.eq.s32.totalorder %s33, 1
      %p287 = por %p285, %p286
      %p288 = scmp.ne.s32.totalorder %s279, %s280
      %p289 = scmp.eq.s32.totalorder %s33, 0
      %p290 = por %p288, %p289
      %p291 = scmp.ne.s32.totalorder %s279, %s280
      %p292 = scmp.eq.s32.totalorder %s34, 1
      %p293 = por %p291, %p292
      %p295 = scmp.ne.s32.totalorder %s280, %s294
      %p296 = scmp.eq.s32.totalorder %s34, 0
      %p297 = por %p295, %p296
      %s299 = sadd.s32 %s298, 1
      %p302 = scmp.eq.s32.totalorder %s28, 1
      %p303 = scmp.ne.s32.totalorder %s298, %s300
      %p304 = scmp.eq.s32.totalorder %s28, 0
      %p305 = por %p303, %p304
      %p306 = scmp.ne.s32.totalorder %s298, %s300
      %p307 = scmp.eq.s32.totalorder %s33, 1
      %p308 = por %p306, %p307
      %p309 = scmp.ne.s32.totalorder %s300, %s301
      %p310 = scmp.eq.s32.totalorder %s33, 0
      %p311 = por %p309, %p310
      %p312 = scmp.ne.s32.totalorder %s300, %s301
      %p313 = scmp.eq.s32.totalorder %s34, 1
      %p314 = por %p312, %p313
      %p316 = scmp.ne.s32.totalorder %s301, %s315
      %p317 = scmp.eq.s32.totalorder %s34, 0
      %p318 = por %p316, %p317
      %s320 = sadd.s32 %s319, 1
      %p323 = scmp.eq.s32.totalorder %s28, 1
      %p324 = scmp.ne.s32.totalorder %s319, %s321
      %p325 = scmp.eq.s32.totalorder %s28, 0
      %p326 = por %p324, %p325
      %p327 = scmp.ne.s32.totalorder %s319, %s321
      %p328 = scmp.eq.s32.totalorder %s33, 1
      %p329 = por %p327, %p328
      %p330 = scmp.ne.s32.totalorder %s321, %s322
      %p331 = scmp.eq.s32.totalorder %s33, 0
      %p332 = por %p330, %p331
      %p333 = scmp.ne.s32.totalorder %s321, %s322
      %p334 = scmp.eq.s32.totalorder %s34, 1
      %p335 = por %p333, %p334
      %p337 = scmp.ne.s32.totalorder %s322, %s336
      %p338 = scmp.eq.s32.totalorder %s34, 0
      %p339 = por %p337, %p338
      %s341 = sadd.s32 %s340, 1
      %p344 = scmp.eq.s32.totalorder %s28, 1
      %p345 = scmp.ne.s32.totalorder %s340, %s342
      %p346 = scmp.eq.s32.totalorder %s28, 0
      %p347 = por %p345, %p346
      %p348 = scmp.ne.s32.totalorder %s340, %s342
      %p349 = scmp.eq.s32.totalorder %s33, 1
      %p350 = por %p348, %p349
      %p351 = scmp.ne.s32.totalorder %s342, %s343
      %p352 = scmp.eq.s32.totalorder %s33, 0
      %p353 = por %p351, %p352
      %p354 = scmp.ne.s32.totalorder %s342, %s343
      %p355 = scmp.eq.s32.totalorder %s34, 1
      %p356 = por %p354, %p355
      %p358 = scmp.ne.s32.totalorder %s343, %s357
      %p359 = scmp.eq.s32.totalorder %s34, 0
      %p360 = por %p358, %p359
      %s362 = sadd.s32 %s361, 1
      %p365 = scmp.eq.s32.totalorder %s28, 1
      %p366 = scmp.ne.s32.totalorder %s361, %s363
      %p367 = scmp.eq.s32.totalorder %s28, 0
      %p368 = por %p366, %p367
      %p369 = scmp.ne.s32.totalorder %s361, %s363
      %p370 = scmp.eq.s32.totalorder %s33, 1
      %p371 = por %p369, %p370
      %p372 = scmp.ne.s32.totalorder %s363, %s364
      %p373 = scmp.eq.s32.totalorder %s33, 0
      %p374 = por %p372, %p373
      %p375 = scmp.ne.s32.totalorder %s363, %s364
      %p376 = scmp.eq.s32.totalorder %s34, 1
      %p377 = por %p375, %p376
      %p379 = scmp.ne.s32.totalorder %s364, %s378
      %p380 = scmp.eq.s32.totalorder %s34, 0
      %p381 = por %p379, %p380
      %s383 = sadd.s32 %s382, 1
      %p386 = scmp.eq.s32.totalorder %s28, 1
      %p387 = scmp.ne.s32.totalorder %s382, %s384
      %p388 = scmp.eq.s32.totalorder %s28, 0
      %p389 = por %p387, %p388
      %p390 = scmp.ne.s32.totalorder %s382, %s384
      %p391 = scmp.eq.s32.totalorder %s33, 1
      %p392 = por %p390, %p391
      %p393 = scmp.ne.s32.totalorder %s384, %s385
      %p394 = scmp.eq.s32.totalorder %s33, 0
      %p395 = por %p393, %p394
      %p396 = scmp.ne.s32.totalorder %s384, %s385
      %p397 = scmp.eq.s32.totalorder %s34, 1
      %p398 = por %p396, %p397
      %p400 = scmp.ne.s32.totalorder %s385, %s399
      %p401 = scmp.eq.s32.totalorder %s34, 0
      %p402 = por %p400, %p401
      %s403 = ssub.s32 %s28, %s35
      %p404 = scmp.eq.s32.totalorder %s403, 0
      %s406 = sadd.s32 %s405, 1
      %s407 = scalar_select %p404, %s405, %s406
      %p410 = pneg %p404
      %p411 = scmp.eq.s32.totalorder %s28, 1
      %p412 = por %p410, %p411
      %p413 = scmp.ne.s32.totalorder %s405, %s408
      %p414 = scmp.eq.s32.totalorder %s28, 0
      %p415 = por %p413, %p414
      %p416 = scmp.ne.s32.totalorder %s405, %s408
      %p417 = scmp.eq.s32.totalorder %s33, 1
      %p418 = por %p416, %p417
      %p419 = scmp.ne.s32.totalorder %s408, %s409
      %p420 = scmp.eq.s32.totalorder %s33, 0
      %p421 = por %p419, %p420
      %p422 = scmp.ne.s32.totalorder %s408, %s409
      %p423 = scmp.eq.s32.totalorder %s34, 1
      %p424 = por %p422, %p423
      %p426 = scmp.ne.s32.totalorder %s409, %s425
      %p427 = scmp.eq.s32.totalorder %s34, 0
      %p428 = por %p426, %p427
      %p429 = scmp.le.s32.totalorder 1, %s28
      %p430 = scmp.lt.s32.totalorder %s28, 3
      %p431 = pnand %p429, %p430
      %p432 = pneg %p431
      // Predicated region
      $region9: #{tpu_custom_call.1} parent=5 // pred_check
        _
      $region10: #{tpu_custom_call.1} parent=5 // pred_check_branch
        %434 = sbr.rel (%p431) target = $region12
      $region11: #{tpu_custom_call.1} parent=5 // pred_region
        %s435 = ssub.s32 %s28, 1
        // Predicated region
        $region13: #{tpu_custom_call.1} parent=11 // pred_check
          %p436 = pneg %p101
        $region14: #{tpu_custom_call.1} parent=11 // pred_check_branch
          %438 = sbr.rel (%p436) target = $region16
        $region15: #{tpu_custom_call.1} parent=11 // pred_region
          _
        $region16: #{tpu_custom_call.1} parent=11 // pred_fallthru
          _
        // Predicated region
        $region17: #{tpu_custom_call.1} parent=11 // pred_check
          %p439 = pneg %p122
        $region18: #{tpu_custom_call.1} parent=11 // pred_check_branch
          %441 = sbr.rel (%p439) target = $region20
        $region19: #{tpu_custom_call.1} parent=11 // pred_region
          _
        $region20: #{tpu_custom_call.1} parent=11 // pred_fallthru
          _
        // Predicated region
        $region21: #{tpu_custom_call.1} parent=11 // pred_check
          %p442 = pneg %p143
        $region22: #{tpu_custom_call.1} parent=11 // pred_check_branch
          %444 = sbr.rel (%p442) target = $region24
        $region23: #{tpu_custom_call.1} parent=11 // pred_region
          _
        $region24: #{tpu_custom_call.1} parent=11 // pred_fallthru
          _
        // Predicated region
        $region25: #{tpu_custom_call.1} parent=11 // pred_check
          %p445 = pneg %p164
        $region26: #{tpu_custom_call.1} parent=11 // pred_check_branch
          %447 = sbr.rel (%p445) target = $region28
        $region27: #{tpu_custom_call.1} parent=11 // pred_region
          _
        $region28: #{tpu_custom_call.1} parent=11 // pred_fallthru
          _
        // Predicated region
        $region29: #{tpu_custom_call.1} parent=11 // pred_check
          %p448 = pneg %p185
        $region30: #{tpu_custom_call.1} parent=11 // pred_check_branch
          %450 = sbr.rel (%p448) target = $region32
        $region31: #{tpu_custom_call.1} parent=11 // pred_region
          _
        $region32: #{tpu_custom_call.1} parent=11 // pred_fallthru
          _
        // Predicated region
        $region33: #{tpu_custom_call.1} parent=11 // pred_check
          %p451 = pneg %p206
        $region34: #{tpu_custom_call.1} parent=11 // pred_check_branch
          %453 = sbr.rel (%p451) target = $region36
        $region35: #{tpu_custom_call.1} parent=11 // pred_region
          _
        $region36: #{tpu_custom_call.1} parent=11 // pred_fallthru
          _
        // Predicated region
        $region37: #{tpu_custom_call.1} parent=11 // pred_check
          %p454 = pneg %p227
        $region38: #{tpu_custom_call.1} parent=11 // pred_check_branch
          %456 = sbr.rel (%p454) target = $region40
        $region39: #{tpu_custom_call.1} parent=11 // pred_region
          _
        $region40: #{tpu_custom_call.1} parent=11 // pred_fallthru
          _
        // Predicated region
        $region41: #{tpu_custom_call.1} parent=11 // pred_check
          %p457 = pneg %p248
        $region42: #{tpu_custom_call.1} parent=11 // pred_check_branch
          %459 = sbr.rel (%p457) target = $region44
        $region43: #{tpu_custom_call.1} parent=11 // pred_region
          _
        $region44: #{tpu_custom_call.1} parent=11 // pred_fallthru
          _
        // Predicated region
        $region45: #{tpu_custom_call.1} parent=11 // pred_check
          %p460 = pneg %p269
        $region46: #{tpu_custom_call.1} parent=11 // pred_check_branch
          %462 = sbr.rel (%p460) target = $region48
        $region47: #{tpu_custom_call.1} parent=11 // pred_region
          %s464 = ssub.s32 512, 512
          %465 = vsyncadd [#allocation4], %s464
          %s466 = sshll.u32 [#allocation3], 4
          %s467 = int_to_ptr.vmem [resolvable:$true] %s466
          %472 = dma.hbm_to_vmem [thread:$0]  %s10, 512, %s467, [#allocation4], 128, 128, 8
        $region48: #{tpu_custom_call.1} parent=11 // pred_fallthru
          _
        // Predicated region
        $region49: #{tpu_custom_call.1} parent=11 // pred_check
          %p473 = pneg %p290
        $region50: #{tpu_custom_call.1} parent=11 // pred_check_branch
          %475 = sbr.rel (%p473) target = $region52
        $region51: #{tpu_custom_call.1} parent=11 // pred_region
          _
        $region52: #{tpu_custom_call.1} parent=11 // pred_fallthru
          _
        // Predicated region
        $region53: #{tpu_custom_call.1} parent=11 // pred_check
          %p476 = pneg %p311
        $region54: #{tpu_custom_call.1} parent=11 // pred_check_branch
          %478 = sbr.rel (%p476) target = $region56
        $region55: #{tpu_custom_call.1} parent=11 // pred_region
          _
        $region56: #{tpu_custom_call.1} parent=11 // pred_fallthru
          _
        // Predicated region
        $region57: #{tpu_custom_call.1} parent=11 // pred_check
          %p479 = pneg %p332
        $region58: #{tpu_custom_call.1} parent=11 // pred_check_branch
          %481 = sbr.rel (%p479) target = $region60
        $region59: #{tpu_custom_call.1} parent=11 // pred_region
          _
        $region60: #{tpu_custom_call.1} parent=11 // pred_fallthru
          _
        // Predicated region
        $region61: #{tpu_custom_call.1} parent=11 // pred_check
          %p482 = pneg %p353
        $region62: #{tpu_custom_call.1} parent=11 // pred_check_branch
          %484 = sbr.rel (%p482) target = $region64
        $region63: #{tpu_custom_call.1} parent=11 // pred_region
          _
        $region64: #{tpu_custom_call.1} parent=11 // pred_fallthru
          _
        // Predicated region
        $region65: #{tpu_custom_call.1} parent=11 // pred_check
          %p485 = pneg %p374
        $region66: #{tpu_custom_call.1} parent=11 // pred_check_branch
          %487 = sbr.rel (%p485) target = $region68
        $region67: #{tpu_custom_call.1} parent=11 // pred_region
          _
        $region68: #{tpu_custom_call.1} parent=11 // pred_fallthru
          _
        // Predicated region
        $region69: #{tpu_custom_call.1} parent=11 // pred_check
          %p488 = pneg %p395
        $region70: #{tpu_custom_call.1} parent=11 // pred_check_branch
          %490 = sbr.rel (%p488) target = $region72
        $region71: #{tpu_custom_call.1} parent=11 // pred_region
          _
        $region72: #{tpu_custom_call.1} parent=11 // pred_fallthru
          _
      $region12: #{tpu_custom_call.1} parent=5 // pred_fallthru
        _
      %p491 = scmp.lt.s32.totalorder %s28, 2
      // Predicated region
      $region73: #{tpu_custom_call.1} parent=5 // pred_check
        %p492 = pneg %p491
      $region74: #{tpu_custom_call.1} parent=5 // pred_check_branch
        %494 = sbr.rel (%p492) target = $region76
      $region75: #{tpu_custom_call.1} parent=5 // pred_region
        // Predicated region
        $region77: #{tpu_custom_call.1} parent=75 // pred_check
          %p495 = pneg %p48
        $region78: #{tpu_custom_call.1} parent=75 // pred_check_branch
          %497 = sbr.rel (%p495) target = $region80
        $region79: #{tpu_custom_call.1} parent=75 // pred_region
          %p498 = scmp.lt.s32.totalorder %s28, 1
          %s499 = scalar_select %p498, %s28, 1
          %s500 = smul.addr %s499, 2
          %s501 = smul.addr %s500, 8
          %s502 = scalar_lea.vmem %s0, %s501
        $region80: #{tpu_custom_call.1} parent=75 // pred_fallthru
          _
        // Predicated region
        $region81: #{tpu_custom_call.1} parent=75 // pred_check
          %p503 = pneg %p74
        $region82: #{tpu_custom_call.1} parent=75 // pred_check_branch
          %505 = sbr.rel (%p503) target = $region84
        $region83: #{tpu_custom_call.1} parent=75 // pred_region
          %p506 = scmp.lt.s32.totalorder %s28, 1
          %s507 = scalar_select %p506, %s28, 1
          %s508 = smul.addr %s507, 2
          %s509 = smul.addr %s508, 8
          %s510 = scalar_lea.vmem %s1, %s509
        $region84: #{tpu_custom_call.1} parent=75 // pred_fallthru
          _
      $region76: #{tpu_custom_call.1} parent=5 // pred_fallthru
        _
      %p511 = scmp.le.s32.totalorder 1, %s28
      %p512 = scmp.lt.s32.totalorder %s28, 3
      %p513 = pnand %p511, %p512
      %p514 = pneg %p513
      // Predicated region
      $region85: #{tpu_custom_call.1} parent=5 // pred_check
        _
      $region86: #{tpu_custom_call.1} parent=5 // pred_check_branch
        %516 = sbr.rel (%p513) target = $region88
      $region87: #{tpu_custom_call.1} parent=5 // pred_region
        %s517 = ssub.s32 %s28, 1
        // Predicated region
        $region89: #{tpu_custom_call.1} parent=87 // pred_check
          %p518 = pneg %p269
        $region90: #{tpu_custom_call.1} parent=87 // pred_check_branch
          %520 = sbr.rel (%p518) target = $region92
        $region91: #{tpu_custom_call.1} parent=87 // pred_region
          %521 = dma.done [#allocation4], 512
        $region92: #{tpu_custom_call.1} parent=87 // pred_fallthru
          _
        %p522 = scmp.lt.s32.totalorder %s33, 1
        %s523 = scalar_select %p522, %s33, 1
        %s524 = smul.addr %s523, 2
        %s525 = smul.addr %s524, 8
        %s526 = scalar_lea.vmem %s0, %s525
        %p527 = pneg %p54
        %p528 = pneg %p51
        %p529 = scmp.lt.s32.totalorder %s33, 1
        %s530 = scalar_select %p529, %s33, 1
        %s531 = smul.addr %s530, 2
        %s532 = smul.addr %s531, 8
        %s533 = scalar_lea.vmem %s1, %s532
        %p534 = pneg %p80
        %p535 = pneg %p77
        %p536 = pneg %p101
        %p537 = pneg %p98
        %p538 = pneg %p122
        %p539 = pneg %p119
        %p540 = pneg %p143
        %p541 = pneg %p140
        %p542 = pneg %p164
        %p543 = pneg %p161
        %p544 = pneg %p185
        %p545 = pneg %p182
        %p546 = pneg %p206
        %p547 = pneg %p203
        %p548 = pneg %p227
        %p549 = pneg %p224
        %p550 = pneg %p248
        %p551 = pneg %p245
        %p552 = pneg %p269
        %p553 = pneg %p266
        %p554 = pneg %p290
        %p555 = pneg %p287
        %p556 = pneg %p311
        %p557 = pneg %p308
        %p558 = pneg %p332
        %p559 = pneg %p329
        %p560 = pneg %p353
        %p561 = pneg %p350
        %p562 = pneg %p374
        %p563 = pneg %p371
        %p564 = pneg %p395
        %p565 = pneg %p392
        %p566 = pneg %p421
        %p567 = pneg %p418
        %s568 = sand.u32 %s408, 1
        %s569 = scalar_lea.sflag [#allocation5], %s568
        %s570 = sand.u32 %s408, 1
        %s571 = smul.addr %s570, 16
        %s572 = scalar_lea.vmem [#allocation6], %s571
        %p573 = scmp.lt.s32.totalorder %s33, 1
        %s574 = scalar_select %p573, %s33, 1
        %s575 = smul.addr %s574, 2
        %s576 = smul.addr %s575, 8
        %s577 = scalar_lea.vmem %s0, %s576
        %p578 = scmp.lt.s32.totalorder %s33, 1
        %s579 = scalar_select %p578, %s33, 1
        %s580 = smul.addr %s579, 2
        %s581 = smul.addr %s580, 8
        %s582 = scalar_lea.vmem %s1, %s581
        %v583 = vld [vmem:[%s577] sm:$0xff]
        %v584 = vld [vmem:[%s577 + $0x8] sm:$0xff]
        %v585 = vld [vmem:[%s582] sm:$0xff]
        %v586 = vld [vmem:[%s582 + $0x8] sm:$0xff]
        %v587 = vadd.f32 %v583, %v585
        %v588 = vadd.f32 %v584, %v586
        %v589 = vld [vmem:[%s2] sm:$0xff]
        %v590 = vld [vmem:[%s2 + $0x8] sm:$0xff]
        %v591 = vld [vmem:[%s2 + $0x10] sm:$0xff]
        %v592 = vld [vmem:[%s2 + $0x18] sm:$0xff]
        %v593 = vld [vmem:[%s3] sm:$0x1]
        %v595 = vlaneseq
        %v596 = vshrl.u32 %v595, 7
        %v597 = vsub.s32 0, %v596
        %v598 = vrot.slane %v593, %v597
        %vm600 = vcmask 261120
        %v602 = vsel %vm600, %v587, 0
        %v605 = vsel %vm600, %v588, 0
        %607 = vmatprep.subr.mxu0 0.0
        %608 = vmatpush1.msra.mxu0 %v589
        %609 = vmatprep.subr.mxu0 0.0
        %610 = vmatpush1.msra.mxu0 %v590
        %611 = vmatprep.subr.mxu0 0.0
        %612 = vmatpush1.msra.mxu0 %v591
        %613 = vmatprep.subr.mxu0 0.0
        %614 = vmatpush1.msra.mxu0 %v592
        %615 = vmatprep.subr.mxu0 0.0
        %616 = vmatpush1.msra.mxu0 0.0
        %617 = vmatprep.subr.mxu0 0.0
        %618 = vmatpush1.msra.mxu0 0.0
        %619 = vmatprep.subr.mxu0 0.0
        %620 = vmatpush1.msra.mxu0 0.0
        %621 = vmatprep.subr.mxu0 0.0
        %622 = vmatpush1.msra.mxu0 0.0
        %623 = vmatprep.subr.mxu0 0.0
        %624 = vmatpush1.msra.mxu0 0.0
        %625 = vmatprep.subr.mxu0 0.0
        %626 = vmatpush1.msra.mxu0 0.0
        %627 = vmatprep.subr.mxu0 0.0
        %628 = vmatpush1.msra.mxu0 0.0
        %629 = vmatprep.subr.mxu0 0.0
        %630 = vmatpush1.msra.mxu0 0.0
        %631 = vmatprep.subr.mxu0 0.0
        %632 = vmatpush1.msra.mxu0 0.0
        %633 = vmatprep.subr.mxu0 0.0
        %634 = vmatpush1.msra.mxu0 0.0
        %635 = vmatprep.subr.mxu0 0.0
        %636 = vmatpush1.msra.mxu0 0.0
        %637 = vmatprep.subr.mxu0 0.0
        %638 = vmatpush1.msra.mxu0 0.0
        %639 = vmatprep.subr.mxu0 0.0
        %640 = vmatpush1.msra.mxu0 0.0
        %641 = vmatprep.subr.mxu0 0.0
        %642 = vmatpush1.msra.mxu0 0.0
        %643 = vmatprep.subr.mxu0 0.0
        %644 = vmatpush1.msra.mxu0 0.0
        %645 = vmatprep.subr.mxu0 0.0
        %646 = vmatpush1.msra.mxu0 0.0
        %647 = vmatprep.subr.mxu0 0.0
        %648 = vmatpush1.msra.mxu0 0.0
        %649 = vmatprep.subr.mxu0 0.0
        %650 = vmatpush1.msra.mxu0 0.0
        %651 = vmatprep.subr.mxu0 0.0
        %652 = vmatpush1.msra.mxu0 0.0
        %653 = vmatprep.subr.mxu0 0.0
        %654 = vmatpush1.msra.mxu0 0.0
        %655 = vmatprep.subr.mxu0 0.0
        %656 = vmatpush1.msra.mxu0 0.0
        %657 = vmatprep.subr.mxu0 0.0
        %658 = vmatpush1.msra.mxu0 0.0
        %659 = vmatprep.subr.mxu0 0.0
        %660 = vmatpush1.msra.mxu0 0.0
        %661 = vmatprep.subr.mxu0 0.0
        %662 = vmatpush1.msra.mxu0 0.0
        %663 = vmatprep.subr.mxu0 0.0
        %664 = vmatpush1.msra.mxu0 0.0
        %665 = vmatprep.subr.mxu0 0.0
        %666 = vmatpush1.msra.mxu0 0.0
        %667 = vmatprep.subr.mxu0 0.0
        %668 = vmatpush1.msra.mxu0 0.0
        %669 = vmatprep.subr.mxu0 0.0
        %670 = vmatpush1.msra.mxu0 0.0
        %671 = vmatprep.mubr.f32.mxu0 0.0
        %672 = vmatmul.mubr.f32.gmra.mrb[0].mxu0 %v602
        %v673 = vpop.f32.mrb[0].mxu0
        %v674 = vadd.f32 %v598, %v673
        %v675 = vpop.f32.mrb[0].mxu0
        %676 = vmatprep.mubr.f32.mxu0 0.0
        %677 = vmatmul.mubr.f32.gmra.mrb[0].mxu0 %v605
        %v678 = vpop.f32.mrb[0].mxu0
        %v679 = vadd.f32 %v598, %v678
        %v680 = vpop.f32.mrb[0].mxu0
        %681 = vdwg.mxu0
        %v682 = vld [vmem:[%s4] sm:$0xff]
        %v683 = vld [vmem:[%s4 + $0x8] sm:$0xff]
        %v684 = vld [vmem:[%s4 + $0x10] sm:$0xff]
        %v685 = vld [vmem:[%s4 + $0x18] sm:$0xff]
        %v686 = vld [vmem:[%s5] sm:$0x1]
        %v688 = vlaneseq
        %v689 = vshrl.u32 %v688, 7
        %v690 = vsub.s32 0, %v689
        %v691 = vrot.slane %v686, %v690
        %v694 = vsel %vm600, %v583, 0
        %v697 = vsel %vm600, %v584, 0
        %699 = vmatprep.subr.mxu0 0.0
        %700 = vmatpush1.msra.mxu0 %v682
        %701 = vmatprep.subr.mxu0 0.0
        %702 = vmatpush1.msra.mxu0 %v683
        %703 = vmatprep.subr.mxu0 0.0
        %704 = vmatpush1.msra.mxu0 %v684
        %705 = vmatprep.subr.mxu0 0.0
        %706 = vmatpush1.msra.mxu0 %v685
        %707 = vmatprep.subr.mxu0 0.0
        %708 = vmatpush1.msra.mxu0 0.0
        %709 = vmatprep.subr.mxu0 0.0
        %710 = vmatpush1.msra.mxu0 0.0
        %711 = vmatprep.subr.mxu0 0.0
        %712 = vmatpush1.msra.mxu0 0.0
        %713 = vmatprep.subr.mxu0 0.0
        %714 = vmatpush1.msra.mxu0 0.0
        %715 = vmatprep.subr.mxu0 0.0
        %716 = vmatpush1.msra.mxu0 0.0
        %717 = vmatprep.subr.mxu0 0.0
        %718 = vmatpush1.msra.mxu0 0.0
        %719 = vmatprep.subr.mxu0 0.0
        %720 = vmatpush1.msra.mxu0 0.0
        %721 = vmatprep.subr.mxu0 0.0
        %722 = vmatpush1.msra.mxu0 0.0
        %723 = vmatprep.subr.mxu0 0.0
        %724 = vmatpush1.msra.mxu0 0.0
        %725 = vmatprep.subr.mxu0 0.0
        %726 = vmatpush1.msra.mxu0 0.0
        %727 = vmatprep.subr.mxu0 0.0
        %728 = vmatpush1.msra.mxu0 0.0
        %729 = vmatprep.subr.mxu0 0.0
        %730 = vmatpush1.msra.mxu0 0.0
        %731 = vmatprep.subr.mxu0 0.0
        %732 = vmatpush1.msra.mxu0 0.0
        %733 = vmatprep.subr.mxu0 0.0
        %734 = vmatpush1.msra.mxu0 0.0
        %735 = vmatprep.subr.mxu0 0.0
        %736 = vmatpush1.msra.mxu0 0.0
        %737 = vmatprep.subr.mxu0 0.0
        %738 = vmatpush1.msra.mxu0 0.0
        %739 = vmatprep.subr.mxu0 0.0
        %740 = vmatpush1.msra.mxu0 0.0
        %741 = vmatprep.subr.mxu0 0.0
        %742 = vmatpush1.msra.mxu0 0.0
        %743 = vmatprep.subr.mxu0 0.0
        %744 = vmatpush1.msra.mxu0 0.0
        %745 = vmatprep.subr.mxu0 0.0
        %746 = vmatpush1.msra.mxu0 0.0
        %747 = vmatprep.subr.mxu0 0.0
        %748 = vmatpush1.msra.mxu0 0.0
        %749 = vmatprep.subr.mxu0 0.0
        %750 = vmatpush1.msra.mxu0 0.0
        %751 = vmatprep.subr.mxu0 0.0
        %752 = vmatpush1.msra.mxu0 0.0
        %753 = vmatprep.subr.mxu0 0.0
        %754 = vmatpush1.msra.mxu0 0.0
        %755 = vmatprep.subr.mxu0 0.0
        %756 = vmatpush1.msra.mxu0 0.0
        %757 = vmatprep.subr.mxu0 0.0
        %758 = vmatpush1.msra.mxu0 0.0
        %759 = vmatprep.subr.mxu0 0.0
        %760 = vmatpush1.msra.mxu0 0.0
        %761 = vmatprep.subr.mxu0 0.0
        %762 = vmatpush1.msra.mxu0 0.0
        %763 = vmatprep.mubr.f32.mxu0 0.0
        %764 = vmatmul.mubr.f32.gmra.mrb[0].mxu0 %v694
        %v765 = vpop.f32.mrb[0].mxu0
        %v766 = vadd.f32 %v691, %v765
        %v767 = vpop.f32.mrb[0].mxu0
        %768 = vmatprep.mubr.f32.mxu0 0.0
        %769 = vmatmul.mubr.f32.gmra.mrb[0].mxu0 %v697
        %v770 = vpop.f32.mrb[0].mxu0
        %v771 = vadd.f32 %v691, %v770
        %v772 = vpop.f32.mrb[0].mxu0
        %773 = vdwg.mxu0
        %776 = vrot.lane.b32.xlu0 %v674, 120
        %v777 = vpop.permute.xlu0 %776
        %778 = vrot.lane.b32.xlu0 %v679, 120
        %v779 = vpop.permute.xlu0 %778
        %782 = vrot.lane.b32.xlu0 %v674, 112
        %v783 = vpop.permute.xlu0 %782
        %784 = vrot.lane.b32.xlu0 %v679, 112
        %v785 = vpop.permute.xlu0 %784
        %788 = vrot.lane.b32.xlu0 %v674, 104
        %v789 = vpop.permute.xlu0 %788
        %790 = vrot.lane.b32.xlu0 %v679, 104
        %v791 = vpop.permute.xlu0 %790
        %v794 = vmul.f32 %v674, 0.35355338
        %v795 = vmul.f32 %v679, 0.35355338
        %v796 = vmul.f32 %v777, 0.35355338
        %v797 = vmul.f32 %v779, 0.35355338
        %v798 = vmul.f32 %v783, 0.35355338
        %v799 = vmul.f32 %v785, 0.35355338
        %v800 = vmul.f32 %v789, 0.35355338
        %v801 = vmul.f32 %v791, 0.35355338
        %804 = vrot.lane.b32.xlu0 %v766, 120
        %v805 = vpop.permute.xlu0 %804
        %806 = vrot.lane.b32.xlu0 %v771, 120
        %v807 = vpop.permute.xlu0 %806
        %810 = vrot.lane.b32.xlu0 %v766, 112
        %v811 = vpop.permute.xlu0 %810
        %812 = vrot.lane.b32.xlu0 %v771, 112
        %v813 = vpop.permute.xlu0 %812
        %816 = vrot.lane.b32.xlu0 %v766, 104
        %v817 = vpop.permute.xlu0 %816
        %818 = vrot.lane.b32.xlu0 %v771, 104
        %v819 = vpop.permute.xlu0 %818
        %822 = vrot.lane.b32.xlu0 %v674, 96
        %v823 = vpop.permute.xlu0 %822
        %824 = vrot.lane.b32.xlu0 %v679, 96
        %v825 = vpop.permute.xlu0 %824
        %vm826 = vcmask 64512
        %v828 = vsel %vm826, %v794, 0
        %v831 = vsel %vm826, %v795, 0
        %v833 = vsel %vm826, %v823, 0
        %v835 = vsel %vm826, %v825, 0
        %837 = vmatprep.subr.mxu0 0.0
        %838 = vmatpush1.xpose.msra.mxu0 %v833
        %839 = vmatprep.subr.mxu0 0.0
        %840 = vmatpush1.xpose.msra.mxu0 %v835
        %841 = vmatprep.subr.mxu0 0.0
        %842 = vmatpush1.xpose.msra.mxu0 0.0
        %843 = vmatprep.subr.mxu0 0.0
        %844 = vmatpush1.xpose.msra.mxu0 0.0
        %845 = vmatprep.subr.mxu0 0.0
        %846 = vmatpush1.xpose.msra.mxu0 0.0
        %847 = vmatprep.subr.mxu0 0.0
        %848 = vmatpush1.xpose.msra.mxu0 0.0
        %849 = vmatprep.subr.mxu0 0.0
        %850 = vmatpush1.xpose.msra.mxu0 0.0
        %851 = vmatprep.subr.mxu0 0.0
        %852 = vmatpush1.xpose.msra.mxu0 0.0
        %853 = vmatprep.subr.mxu0 0.0
        %854 = vmatpush1.xpose.msra.mxu0 0.0
        %855 = vmatprep.subr.mxu0 0.0
        %856 = vmatpush1.xpose.msra.mxu0 0.0
        %857 = vmatprep.subr.mxu0 0.0
        %858 = vmatpush1.xpose.msra.mxu0 0.0
        %859 = vmatprep.subr.mxu0 0.0
        %860 = vmatpush1.xpose.msra.mxu0 0.0
        %861 = vmatprep.subr.mxu0 0.0
        %862 = vmatpush1.xpose.msra.mxu0 0.0
        %863 = vmatprep.subr.mxu0 0.0
        %864 = vmatpush1.xpose.msra.mxu0 0.0
        %865 = vmatprep.subr.mxu0 0.0
        %866 = vmatpush1.xpose.msra.mxu0 0.0
        %867 = vmatprep.subr.mxu0 0.0
        %868 = vmatpush1.xpose.msra.mxu0 0.0
        %869 = vmatprep.subr.mxu0 0.0
        %870 = vmatpush1.xpose.msra.mxu0 0.0
        %871 = vmatprep.subr.mxu0 0.0
        %872 = vmatpush1.xpose.msra.mxu0 0.0
        %873 = vmatprep.subr.mxu0 0.0
        %874 = vmatpush1.xpose.msra.mxu0 0.0
        %875 = vmatprep.subr.mxu0 0.0
        %876 = vmatpush1.xpose.msra.mxu0 0.0
        %877 = vmatprep.subr.mxu0 0.0
        %878 = vmatpush1.xpose.msra.mxu0 0.0
        %879 = vmatprep.subr.mxu0 0.0
        %880 = vmatpush1.xpose.msra.mxu0 0.0
        %881 = vmatprep.subr.mxu0 0.0
        %882 = vmatpush1.xpose.msra.mxu0 0.0
        %883 = vmatprep.subr.mxu0 0.0
        %884 = vmatpush1.xpose.msra.mxu0 0.0
        %885 = vmatprep.subr.mxu0 0.0
        %886 = vmatpush1.xpose.msra.mxu0 0.0
        %887 = vmatprep.subr.mxu0 0.0
        %888 = vmatpush1.xpose.msra.mxu0 0.0
        %889 = vmatprep.subr.mxu0 0.0
        %890 = vmatpush1.xpose.msra.mxu0 0.0
        %891 = vmatprep.subr.mxu0 0.0
        %892 = vmatpush1.xpose.msra.mxu0 0.0
        %893 = vmatprep.subr.mxu0 0.0
        %894 = vmatpush1.xpose.msra.mxu0 0.0
        %895 = vmatprep.subr.mxu0 0.0
        %896 = vmatpush1.xpose.msra.mxu0 0.0
        %897 = vmatprep.subr.mxu0 0.0
        %898 = vmatpush1.xpose.msra.mxu0 0.0
        %899 = vmatprep.subr.mxu0 0.0
        %900 = vmatpush1.xpose.msra.mxu0 0.0
        %901 = vmatprep.mubr.f32.mxu0 0.0
        %902 = vmatmul.mubr.f32.gmra.mrb[0].mxu0 %v828
        %v903 = vpop.f32.mrb[0].mxu0
        %v904 = vadd.f32 0.0, %v903
        %v905 = vpop.f32.mrb[0].mxu0
        %906 = vmatprep.mubr.f32.mxu0 0.0
        %907 = vmatmul.mubr.f32.gmra.mrb[0].mxu0 %v831
        %v908 = vpop.f32.mrb[0].mxu0
        %v909 = vadd.f32 0.0, %v908
        %v910 = vpop.f32.mrb[0].mxu0
        %911 = vdwg.mxu0
        %912 = vrot.lane.b32.xlu0 %v777, 96
        %v913 = vpop.permute.xlu0 %912
        %914 = vrot.lane.b32.xlu0 %v779, 96
        %v915 = vpop.permute.xlu0 %914
        %v917 = vsel %vm826, %v796, 0
        %v920 = vsel %vm826, %v797, 0
        %v922 = vsel %vm826, %v913, 0
        %v924 = vsel %vm826, %v915, 0
        %926 = vmatprep.subr.mxu0 0.0
        %927 = vmatpush1.xpose.msra.mxu0 %v922
        %928 = vmatprep.subr.mxu0 0.0
        %929 = vmatpush1.xpose.msra.mxu0 %v924
        %930 = vmatprep.subr.mxu0 0.0
        %931 = vmatpush1.xpose.msra.mxu0 0.0
        %932 = vmatprep.subr.mxu0 0.0
        %933 = vmatpush1.xpose.msra.mxu0 0.0
        %934 = vmatprep.subr.mxu0 0.0
        %935 = vmatpush1.xpose.msra.mxu0 0.0
        %936 = vmatprep.subr.mxu0 0.0
        %937 = vmatpush1.xpose.msra.mxu0 0.0
        %938 = vmatprep.subr.mxu0 0.0
        %939 = vmatpush1.xpose.msra.mxu0 0.0
        %940 = vmatprep.subr.mxu0 0.0
        %941 = vmatpush1.xpose.msra.mxu0 0.0
        %942 = vmatprep.subr.mxu0 0.0
        %943 = vmatpush1.xpose.msra.mxu0 0.0
        %944 = vmatprep.subr.mxu0 0.0
        %945 = vmatpush1.xpose.msra.mxu0 0.0
        %946 = vmatprep.subr.mxu0 0.0
        %947 = vmatpush1.xpose.msra.mxu0 0.0
        %948 = vmatprep.subr.mxu0 0.0
        %949 = vmatpush1.xpose.msra.mxu0 0.0
        %950 = vmatprep.subr.mxu0 0.0
        %951 = vmatpush1.xpose.msra.mxu0 0.0
        %952 = vmatprep.subr.mxu0 0.0
        %953 = vmatpush1.xpose.msra.mxu0 0.0
        %954 = vmatprep.subr.mxu0 0.0
        %955 = vmatpush1.xpose.msra.mxu0 0.0
        %956 = vmatprep.subr.mxu0 0.0
        %957 = vmatpush1.xpose.msra.mxu0 0.0
        %958 = vmatprep.subr.mxu0 0.0
        %959 = vmatpush1.xpose.msra.mxu0 0.0
        %960 = vmatprep.subr.mxu0 0.0
        %961 = vmatpush1.xpose.msra.mxu0 0.0
        %962 = vmatprep.subr.mxu0 0.0
        %963 = vmatpush1.xpose.msra.mxu0 0.0
        %964 = vmatprep.subr.mxu0 0.0
        %965 = vmatpush1.xpose.msra.mxu0 0.0
        %966 = vmatprep.subr.mxu0 0.0
        %967 = vmatpush1.xpose.msra.mxu0 0.0
        %968 = vmatprep.subr.mxu0 0.0
        %969 = vmatpush1.xpose.msra.mxu0 0.0
        %970 = vmatprep.subr.mxu0 0.0
        %971 = vmatpush1.xpose.msra.mxu0 0.0
        %972 = vmatprep.subr.mxu0 0.0
        %973 = vmatpush1.xpose.msra.mxu0 0.0
        %974 = vmatprep.subr.mxu0 0.0
        %975 = vmatpush1.xpose.msra.mxu0 0.0
        %976 = vmatprep.subr.mxu0 0.0
        %977 = vmatpush1.xpose.msra.mxu0 0.0
        %978 = vmatprep.subr.mxu0 0.0
        %979 = vmatpush1.xpose.msra.mxu0 0.0
        %980 = vmatprep.subr.mxu0 0.0
        %981 = vmatpush1.xpose.msra.mxu0 0.0
        %982 = vmatprep.subr.mxu0 0.0
        %983 = vmatpush1.xpose.msra.mxu0 0.0
        %984 = vmatprep.subr.mxu0 0.0
        %985 = vmatpush1.xpose.msra.mxu0 0.0
        %986 = vmatprep.subr.mxu0 0.0
        %987 = vmatpush1.xpose.msra.mxu0 0.0
        %988 = vmatprep.subr.mxu0 0.0
        %989 = vmatpush1.xpose.msra.mxu0 0.0
        %990 = vmatprep.mubr.f32.mxu0 0.0
        %991 = vmatmul.mubr.f32.gmra.mrb[0].mxu0 %v917
        %v992 = vpop.f32.mrb[0].mxu0
        %v993 = vadd.f32 0.0, %v992
        %v994 = vpop.f32.mrb[0].mxu0
        %995 = vmatprep.mubr.f32.mxu0 0.0
        %996 = vmatmul.mubr.f32.gmra.mrb[0].mxu0 %v920
        %v997 = vpop.f32.mrb[0].mxu0
        %v998 = vadd.f32 0.0, %v997
        %v999 = vpop.f32.mrb[0].mxu0
        %1000 = vdwg.mxu0
        %1001 = vrot.lane.b32.xlu0 %v783, 96
        %v1002 = vpop.permute.xlu0 %1001
        %1003 = vrot.lane.b32.xlu0 %v785, 96
        %v1004 = vpop.permute.xlu0 %1003
        %v1006 = vsel %vm826, %v798, 0
        %v1009 = vsel %vm826, %v799, 0
        %v1011 = vsel %vm826, %v1002, 0
        %v1013 = vsel %vm826, %v1004, 0
        %1015 = vmatprep.subr.mxu0 0.0
        %1016 = vmatpush1.xpose.msra.mxu0 %v1011
        %1017 = vmatprep.subr.mxu0 0.0
        %1018 = vmatpush1.xpose.msra.mxu0 %v1013
        %1019 = vmatprep.subr.mxu0 0.0
        %1020 = vmatpush1.xpose.msra.mxu0 0.0
        %1021 = vmatprep.subr.mxu0 0.0
        %1022 = vmatpush1.xpose.msra.mxu0 0.0
        %1023 = vmatprep.subr.mxu0 0.0
        %1024 = vmatpush1.xpose.msra.mxu0 0.0
        %1025 = vmatprep.subr.mxu0 0.0
        %1026 = vmatpush1.xpose.msra.mxu0 0.0
        %1027 = vmatprep.subr.mxu0 0.0
        %1028 = vmatpush1.xpose.msra.mxu0 0.0
        %1029 = vmatprep.subr.mxu0 0.0
        %1030 = vmatpush1.xpose.msra.mxu0 0.0
        %1031 = vmatprep.subr.mxu0 0.0
        %1032 = vmatpush1.xpose.msra.mxu0 0.0
        %1033 = vmatprep.subr.mxu0 0.0
        %1034 = vmatpush1.xpose.msra.mxu0 0.0
        %1035 = vmatprep.subr.mxu0 0.0
        %1036 = vmatpush1.xpose.msra.mxu0 0.0
        %1037 = vmatprep.subr.mxu0 0.0
        %1038 = vmatpush1.xpose.msra.mxu0 0.0
        %1039 = vmatprep.subr.mxu0 0.0
        %1040 = vmatpush1.xpose.msra.mxu0 0.0
        %1041 = vmatprep.subr.mxu0 0.0
        %1042 = vmatpush1.xpose.msra.mxu0 0.0
        %1043 = vmatprep.subr.mxu0 0.0
        %1044 = vmatpush1.xpose.msra.mxu0 0.0
        %1045 = vmatprep.subr.mxu0 0.0
        %1046 = vmatpush1.xpose.msra.mxu0 0.0
        %1047 = vmatprep.subr.mxu0 0.0
        %1048 = vmatpush1.xpose.msra.mxu0 0.0
        %1049 = vmatprep.subr.mxu0 0.0
        %1050 = vmatpush1.xpose.msra.mxu0 0.0
        %1051 = vmatprep.subr.mxu0 0.0
        %1052 = vmatpush1.xpose.msra.mxu0 0.0
        %1053 = vmatprep.subr.mxu0 0.0
        %1054 = vmatpush1.xpose.msra.mxu0 0.0
        %1055 = vmatprep.subr.mxu0 0.0
        %1056 = vmatpush1.xpose.msra.mxu0 0.0
        %1057 = vmatprep.subr.mxu0 0.0
        %1058 = vmatpush1.xpose.msra.mxu0 0.0
        %1059 = vmatprep.subr.mxu0 0.0
        %1060 = vmatpush1.xpose.msra.mxu0 0.0
        %1061 = vmatprep.subr.mxu0 0.0
        %1062 = vmatpush1.xpose.msra.mxu0 0.0
        %1063 = vmatprep.subr.mxu0 0.0
        %1064 = vmatpush1.xpose.msra.mxu0 0.0
        %1065 = vmatprep.subr.mxu0 0.0
        %1066 = vmatpush1.xpose.msra.mxu0 0.0
        %1067 = vmatprep.subr.mxu0 0.0
        %1068 = vmatpush1.xpose.msra.mxu0 0.0
        %1069 = vmatprep.subr.mxu0 0.0
        %1070 = vmatpush1.xpose.msra.mxu0 0.0
        %1071 = vmatprep.subr.mxu0 0.0
        %1072 = vmatpush1.xpose.msra.mxu0 0.0
        %1073 = vmatprep.subr.mxu0 0.0
        %1074 = vmatpush1.xpose.msra.mxu0 0.0
        %1075 = vmatprep.subr.mxu0 0.0
        %1076 = vmatpush1.xpose.msra.mxu0 0.0
        %1077 = vmatprep.subr.mxu0 0.0
        %1078 = vmatpush1.xpose.msra.mxu0 0.0
        %1079 = vmatprep.mubr.f32.mxu0 0.0
        %1080 = vmatmul.mubr.f32.gmra.mrb[0].mxu0 %v1006
        %v1081 = vpop.f32.mrb[0].mxu0
        %v1082 = vadd.f32 0.0, %v1081
        %v1083 = vpop.f32.mrb[0].mxu0
        %1084 = vmatprep.mubr.f32.mxu0 0.0
        %1085 = vmatmul.mubr.f32.gmra.mrb[0].mxu0 %v1009
        %v1086 = vpop.f32.mrb[0].mxu0
        %v1087 = vadd.f32 0.0, %v1086
        %v1088 = vpop.f32.mrb[0].mxu0
        %1089 = vdwg.mxu0
        %1090 = vrot.lane.b32.xlu0 %v789, 96
        %v1091 = vpop.permute.xlu0 %1090
        %1092 = vrot.lane.b32.xlu0 %v791, 96
        %v1093 = vpop.permute.xlu0 %1092
        %v1095 = vsel %vm826, %v800, 0
        %v1098 = vsel %vm826, %v801, 0
        %v1100 = vsel %vm826, %v1091, 0
        %v1102 = vsel %vm826, %v1093, 0
        %1104 = vmatprep.subr.mxu0 0.0
        %1105 = vmatpush1.xpose.msra.mxu0 %v1100
        %1106 = vmatprep.subr.mxu0 0.0
        %1107 = vmatpush1.xpose.msra.mxu0 %v1102
        %1108 = vmatprep.subr.mxu0 0.0
        %1109 = vmatpush1.xpose.msra.mxu0 0.0
        %1110 = vmatprep.subr.mxu0 0.0
        %1111 = vmatpush1.xpose.msra.mxu0 0.0
        %1112 = vmatprep.subr.mxu0 0.0
        %1113 = vmatpush1.xpose.msra.mxu0 0.0
        %1114 = vmatprep.subr.mxu0 0.0
        %1115 = vmatpush1.xpose.msra.mxu0 0.0
        %1116 = vmatprep.subr.mxu0 0.0
        %1117 = vmatpush1.xpose.msra.mxu0 0.0
        %1118 = vmatprep.subr.mxu0 0.0
        %1119 = vmatpush1.xpose.msra.mxu0 0.0
        %1120 = vmatprep.subr.mxu0 0.0
        %1121 = vmatpush1.xpose.msra.mxu0 0.0
        %1122 = vmatprep.subr.mxu0 0.0
        %1123 = vmatpush1.xpose.msra.mxu0 0.0
        %1124 = vmatprep.subr.mxu0 0.0
        %1125 = vmatpush1.xpose.msra.mxu0 0.0
        %1126 = vmatprep.subr.mxu0 0.0
        %1127 = vmatpush1.xpose.msra.mxu0 0.0
        %1128 = vmatprep.subr.mxu0 0.0
        %1129 = vmatpush1.xpose.msra.mxu0 0.0
        %1130 = vmatprep.subr.mxu0 0.0
        %1131 = vmatpush1.xpose.msra.mxu0 0.0
        %1132 = vmatprep.subr.mxu0 0.0
        %1133 = vmatpush1.xpose.msra.mxu0 0.0
        %1134 = vmatprep.subr.mxu0 0.0
        %1135 = vmatpush1.xpose.msra.mxu0 0.0
        %1136 = vmatprep.subr.mxu0 0.0
        %1137 = vmatpush1.xpose.msra.mxu0 0.0
        %1138 = vmatprep.subr.mxu0 0.0
        %1139 = vmatpush1.xpose.msra.mxu0 0.0
        %1140 = vmatprep.subr.mxu0 0.0
        %1141 = vmatpush1.xpose.msra.mxu0 0.0
        %1142 = vmatprep.subr.mxu0 0.0
        %1143 = vmatpush1.xpose.msra.mxu0 0.0
        %1144 = vmatprep.subr.mxu0 0.0
        %1145 = vmatpush1.xpose.msra.mxu0 0.0
        %1146 = vmatprep.subr.mxu0 0.0
        %1147 = vmatpush1.xpose.msra.mxu0 0.0
        %1148 = vmatprep.subr.mxu0 0.0
        %1149 = vmatpush1.xpose.msra.mxu0 0.0
        %1150 = vmatprep.subr.mxu0 0.0
        %1151 = vmatpush1.xpose.msra.mxu0 0.0
        %1152 = vmatprep.subr.mxu0 0.0
        %1153 = vmatpush1.xpose.msra.mxu0 0.0
        %1154 = vmatprep.subr.mxu0 0.0
        %1155 = vmatpush1.xpose.msra.mxu0 0.0
        %1156 = vmatprep.subr.mxu0 0.0
        %1157 = vmatpush1.xpose.msra.mxu0 0.0
        %1158 = vmatprep.subr.mxu0 0.0
        %1159 = vmatpush1.xpose.msra.mxu0 0.0
        %1160 = vmatprep.subr.mxu0 0.0
        %1161 = vmatpush1.xpose.msra.mxu0 0.0
        %1162 = vmatprep.subr.mxu0 0.0
        %1163 = vmatpush1.xpose.msra.mxu0 0.0
        %1164 = vmatprep.subr.mxu0 0.0
        %1165 = vmatpush1.xpose.msra.mxu0 0.0
        %1166 = vmatprep.subr.mxu0 0.0
        %1167 = vmatpush1.xpose.msra.mxu0 0.0
        %1168 = vmatprep.mubr.f32.mxu0 0.0
        %1169 = vmatmul.mubr.f32.gmra.mrb[0].mxu0 %v1095
        %v1170 = vpop.f32.mrb[0].mxu0
        %v1171 = vadd.f32 0.0, %v1170
        %v1172 = vpop.f32.mrb[0].mxu0
        %1173 = vmatprep.mubr.f32.mxu0 0.0
        %1174 = vmatmul.mubr.f32.gmra.mrb[0].mxu0 %v1098
        %v1175 = vpop.f32.mrb[0].mxu0
        %v1176 = vadd.f32 0.0, %v1175
        %v1177 = vpop.f32.mrb[0].mxu0
        %1178 = vdwg.mxu0
        %vm1179 = vcmask 130048
        %v1180 = vsel %vm1179, %v904, -inf
        %1181 = vmax.xlane.f32.xlu0 %v1180
        %v1182 = vpop.xlane.xlu0 %1181
        %v1183 = vsel %vm1179, %v909, -inf
        %1184 = vmax.xlane.f32.xlu0 %v1183
        %v1185 = vpop.xlane.xlu0 %1184
        %v1186 = vsel %vm1179, %v993, -inf
        %1187 = vmax.xlane.f32.xlu0 %v1186
        %v1188 = vpop.xlane.xlu0 %1187
        %v1189 = vsel %vm1179, %v998, -inf
        %1190 = vmax.xlane.f32.xlu0 %v1189
        %v1191 = vpop.xlane.xlu0 %1190
        %v1192 = vsel %vm1179, %v1082, -inf
        %1193 = vmax.xlane.f32.xlu0 %v1192
        %v1194 = vpop.xlane.xlu0 %1193
        %v1195 = vsel %vm1179, %v1087, -inf
        %1196 = vmax.xlane.f32.xlu0 %v1195
        %v1197 = vpop.xlane.xlu0 %1196
        %v1198 = vsel %vm1179, %v1171, -inf
        %1199 = vmax.xlane.f32.xlu0 %v1198
        %v1200 = vpop.xlane.xlu0 %1199
        %v1201 = vsel %vm1179, %v1176, -inf
        %1202 = vmax.xlane.f32.xlu0 %v1201
        %v1203 = vpop.xlane.xlu0 %1202
        %v1204 = vsub.f32 %v904, %v1182
        %v1205 = vsub.f32 %v909, %v1185
        %v1206 = vsub.f32 %v993, %v1188
        %v1207 = vsub.f32 %v998, %v1191
        %v1208 = vsub.f32 %v1082, %v1194
        %v1209 = vsub.f32 %v1087, %v1197
        %v1210 = vsub.f32 %v1171, %v1200
        %v1211 = vsub.f32 %v1176, %v1203
        %v1212 = vmul.f32 %v1204, 1.442695
        %v1213 = vpow.pop %v1212
        %v1214 = vmul.f32 %v1205, 1.442695
        %v1215 = vpow.pop %v1214
        %v1216 = vmul.f32 %v1206, 1.442695
        %v1217 = vpow.pop %v1216
        %v1218 = vmul.f32 %v1207, 1.442695
        %v1219 = vpow.pop %v1218
        %v1220 = vmul.f32 %v1208, 1.442695
        %v1221 = vpow.pop %v1220
        %v1222 = vmul.f32 %v1209, 1.442695
        %v1223 = vpow.pop %v1222
        %v1224 = vmul.f32 %v1210, 1.442695
        %v1225 = vpow.pop %v1224
        %v1226 = vmul.f32 %v1211, 1.442695
        %v1227 = vpow.pop %v1226
        %v1228 = vsel %vm1179, %v1213, 0.0
        %1229 = vadd.xlane.f32.xlu0 %v1228
        %v1230 = vpop.xlane.xlu0 %1229
        %v1231 = vsel %vm1179, %v1215, 0.0
        %1232 = vadd.xlane.f32.xlu0 %v1231
        %v1233 = vpop.xlane.xlu0 %1232
        %v1234 = vsel %vm1179, %v1217, 0.0
        %1235 = vadd.xlane.f32.xlu0 %v1234
        %v1236 = vpop.xlane.xlu0 %1235
        %v1237 = vsel %vm1179, %v1219, 0.0
        %1238 = vadd.xlane.f32.xlu0 %v1237
        %v1239 = vpop.xlane.xlu0 %1238
        %v1240 = vsel %vm1179, %v1221, 0.0
        %1241 = vadd.xlane.f32.xlu0 %v1240
        %v1242 = vpop.xlane.xlu0 %1241
        %v1243 = vsel %vm1179, %v1223, 0.0
        %1244 = vadd.xlane.f32.xlu0 %v1243
        %v1245 = vpop.xlane.xlu0 %1244
        %v1246 = vsel %vm1179, %v1225, 0.0
        %1247 = vadd.xlane.f32.xlu0 %v1246
        %v1248 = vpop.xlane.xlu0 %1247
        %v1249 = vsel %vm1179, %v1227, 0.0
        %1250 = vadd.xlane.f32.xlu0 %v1249
        %v1251 = vpop.xlane.xlu0 %1250
        %v1252 = vrcp.pop %v1230
        %v1253 = vrcp.pop %v1233
        %v1254 = vrcp.pop %v1236
        %v1255 = vrcp.pop %v1239
        %v1256 = vrcp.pop %v1242
        %v1257 = vrcp.pop %v1245
        %v1258 = vrcp.pop %v1248
        %v1259 = vrcp.pop %v1251
        %v1260 = vmul.f32 %v1213, %v1252
        %v1261 = vmul.f32 %v1215, %v1253
        %v1262 = vmul.f32 %v1217, %v1254
        %v1263 = vmul.f32 %v1219, %v1255
        %v1264 = vmul.f32 %v1221, %v1256
        %v1265 = vmul.f32 %v1223, %v1257
        %v1266 = vmul.f32 %v1225, %v1258
        %v1267 = vmul.f32 %v1227, %v1259
        %v1269 = vsel %vm1179, %v1260, 0
        %v1272 = vsel %vm1179, %v1261, 0
        %1274 = vmatprep.subr.mxu0 0.0
        %1275 = vmatpush1.msra.mxu0 %v766
        %1276 = vmatprep.subr.mxu0 0.0
        %1277 = vmatpush1.msra.mxu0 %v771
        %1278 = vmatprep.subr.mxu0 0.0
        %1279 = vmatpush1.msra.mxu0 0.0
        %1280 = vmatprep.subr.mxu0 0.0
        %1281 = vmatpush1.msra.mxu0 0.0
        %1282 = vmatprep.subr.mxu0 0.0
        %1283 = vmatpush1.msra.mxu0 0.0
        %1284 = vmatprep.subr.mxu0 0.0
        %1285 = vmatpush1.msra.mxu0 0.0
        %1286 = vmatprep.subr.mxu0 0.0
        %1287 = vmatpush1.msra.mxu0 0.0
        %1288 = vmatprep.subr.mxu0 0.0
        %1289 = vmatpush1.msra.mxu0 0.0
        %1290 = vmatprep.subr.mxu0 0.0
        %1291 = vmatpush1.msra.mxu0 0.0
        %1292 = vmatprep.subr.mxu0 0.0
        %1293 = vmatpush1.msra.mxu0 0.0
        %1294 = vmatprep.subr.mxu0 0.0
        %1295 = vmatpush1.msra.mxu0 0.0
        %1296 = vmatprep.subr.mxu0 0.0
        %1297 = vmatpush1.msra.mxu0 0.0
        %1298 = vmatprep.subr.mxu0 0.0
        %1299 = vmatpush1.msra.mxu0 0.0
        %1300 = vmatprep.subr.mxu0 0.0
        %1301 = vmatpush1.msra.mxu0 0.0
        %1302 = vmatprep.subr.mxu0 0.0
        %1303 = vmatpush1.msra.mxu0 0.0
        %1304 = vmatprep.subr.mxu0 0.0
        %1305 = vmatpush1.msra.mxu0 0.0
        %1306 = vmatprep.subr.mxu0 0.0
        %1307 = vmatpush1.msra.mxu0 0.0
        %1308 = vmatprep.subr.mxu0 0.0
        %1309 = vmatpush1.msra.mxu0 0.0
        %1310 = vmatprep.subr.mxu0 0.0
        %1311 = vmatpush1.msra.mxu0 0.0
        %1312 = vmatprep.subr.mxu0 0.0
        %1313 = vmatpush1.msra.mxu0 0.0
        %1314 = vmatprep.subr.mxu0 0.0
        %1315 = vmatpush1.msra.mxu0 0.0
        %1316 = vmatprep.subr.mxu0 0.0
        %1317 = vmatpush1.msra.mxu0 0.0
        %1318 = vmatprep.subr.mxu0 0.0
        %1319 = vmatpush1.msra.mxu0 0.0
        %1320 = vmatprep.subr.mxu0 0.0
        %1321 = vmatpush1.msra.mxu0 0.0
        %1322 = vmatprep.subr.mxu0 0.0
        %1323 = vmatpush1.msra.mxu0 0.0
        %1324 = vmatprep.subr.mxu0 0.0
        %1325 = vmatpush1.msra.mxu0 0.0
        %1326 = vmatprep.subr.mxu0 0.0
        %1327 = vmatpush1.msra.mxu0 0.0
        %1328 = vmatprep.subr.mxu0 0.0
        %1329 = vmatpush1.msra.mxu0 0.0
        %1330 = vmatprep.subr.mxu0 0.0
        %1331 = vmatpush1.msra.mxu0 0.0
        %1332 = vmatprep.subr.mxu0 0.0
        %1333 = vmatpush1.msra.mxu0 0.0
        %1334 = vmatprep.subr.mxu0 0.0
        %1335 = vmatpush1.msra.mxu0 0.0
        %1336 = vmatprep.subr.mxu0 0.0
        %1337 = vmatpush1.msra.mxu0 0.0
        %1338 = vmatprep.mubr.f32.mxu0 0.0
        %1339 = vmatmul.mubr.f32.gmra.mrb[0].mxu0 %v1269
        %v1340 = vpop.f32.mrb[0].mxu0
        %v1341 = vadd.f32 0.0, %v1340
        %v1342 = vpop.f32.mrb[0].mxu0
        %1343 = vmatprep.mubr.f32.mxu0 0.0
        %1344 = vmatmul.mubr.f32.gmra.mrb[0].mxu0 %v1272
        %v1345 = vpop.f32.mrb[0].mxu0
        %v1346 = vadd.f32 0.0, %v1345
        %v1347 = vpop.f32.mrb[0].mxu0
        %1348 = vdwg.mxu0
        %v1350 = vsel %vm1179, %v1262, 0
        %v1353 = vsel %vm1179, %v1263, 0
        %1355 = vmatprep.subr.mxu0 0.0
        %1356 = vmatpush1.msra.mxu0 %v805
        %1357 = vmatprep.subr.mxu0 0.0
        %1358 = vmatpush1.msra.mxu0 %v807
        %1359 = vmatprep.subr.mxu0 0.0
        %1360 = vmatpush1.msra.mxu0 0.0
        %1361 = vmatprep.subr.mxu0 0.0
        %1362 = vmatpush1.msra.mxu0 0.0
        %1363 = vmatprep.subr.mxu0 0.0
        %1364 = vmatpush1.msra.mxu0 0.0
        %1365 = vmatprep.subr.mxu0 0.0
        %1366 = vmatpush1.msra.mxu0 0.0
        %1367 = vmatprep.subr.mxu0 0.0
        %1368 = vmatpush1.msra.mxu0 0.0
        %1369 = vmatprep.subr.mxu0 0.0
        %1370 = vmatpush1.msra.mxu0 0.0
        %1371 = vmatprep.subr.mxu0 0.0
        %1372 = vmatpush1.msra.mxu0 0.0
        %1373 = vmatprep.subr.mxu0 0.0
        %1374 = vmatpush1.msra.mxu0 0.0
        %1375 = vmatprep.subr.mxu0 0.0
        %1376 = vmatpush1.msra.mxu0 0.0
        %1377 = vmatprep.subr.mxu0 0.0
        %1378 = vmatpush1.msra.mxu0 0.0
        %1379 = vmatprep.subr.mxu0 0.0
        %1380 = vmatpush1.msra.mxu0 0.0
        %1381 = vmatprep.subr.mxu0 0.0
        %1382 = vmatpush1.msra.mxu0 0.0
        %1383 = vmatprep.subr.mxu0 0.0
        %1384 = vmatpush1.msra.mxu0 0.0
        %1385 = vmatprep.subr.mxu0 0.0
        %1386 = vmatpush1.msra.mxu0 0.0
        %1387 = vmatprep.subr.mxu0 0.0
        %1388 = vmatpush1.msra.mxu0 0.0
        %1389 = vmatprep.subr.mxu0 0.0
        %1390 = vmatpush1.msra.mxu0 0.0
        %1391 = vmatprep.subr.mxu0 0.0
        %1392 = vmatpush1.msra.mxu0 0.0
        %1393 = vmatprep.subr.mxu0 0.0
        %1394 = vmatpush1.msra.mxu0 0.0
        %1395 = vmatprep.subr.mxu0 0.0
        %1396 = vmatpush1.msra.mxu0 0.0
        %1397 = vmatprep.subr.mxu0 0.0
        %1398 = vmatpush1.msra.mxu0 0.0
        %1399 = vmatprep.subr.mxu0 0.0
        %1400 = vmatpush1.msra.mxu0 0.0
        %1401 = vmatprep.subr.mxu0 0.0
        %1402 = vmatpush1.msra.mxu0 0.0
        %1403 = vmatprep.subr.mxu0 0.0
        %1404 = vmatpush1.msra.mxu0 0.0
        %1405 = vmatprep.subr.mxu0 0.0
        %1406 = vmatpush1.msra.mxu0 0.0
        %1407 = vmatprep.subr.mxu0 0.0
        %1408 = vmatpush1.msra.mxu0 0.0
        %1409 = vmatprep.subr.mxu0 0.0
        %1410 = vmatpush1.msra.mxu0 0.0
        %1411 = vmatprep.subr.mxu0 0.0
        %1412 = vmatpush1.msra.mxu0 0.0
        %1413 = vmatprep.subr.mxu0 0.0
        %1414 = vmatpush1.msra.mxu0 0.0
        %1415 = vmatprep.subr.mxu0 0.0
        %1416 = vmatpush1.msra.mxu0 0.0
        %1417 = vmatprep.subr.mxu0 0.0
        %1418 = vmatpush1.msra.mxu0 0.0
        %1419 = vmatprep.mubr.f32.mxu0 0.0
        %1420 = vmatmul.mubr.f32.gmra.mrb[0].mxu0 %v1350
        %v1421 = vpop.f32.mrb[0].mxu0
        %v1422 = vadd.f32 0.0, %v1421
        %v1423 = vpop.f32.mrb[0].mxu0
        %1424 = vmatprep.mubr.f32.mxu0 0.0
        %1425 = vmatmul.mubr.f32.gmra.mrb[0].mxu0 %v1353
        %v1426 = vpop.f32.mrb[0].mxu0
        %v1427 = vadd.f32 0.0, %v1426
        %v1428 = vpop.f32.mrb[0].mxu0
        %1429 = vdwg.mxu0
        %v1431 = vsel %vm1179, %v1264, 0
        %v1434 = vsel %vm1179, %v1265, 0
        %1436 = vmatprep.subr.mxu0 0.0
        %1437 = vmatpush1.msra.mxu0 %v811
        %1438 = vmatprep.subr.mxu0 0.0
        %1439 = vmatpush1.msra.mxu0 %v813
        %1440 = vmatprep.subr.mxu0 0.0
        %1441 = vmatpush1.msra.mxu0 0.0
        %1442 = vmatprep.subr.mxu0 0.0
        %1443 = vmatpush1.msra.mxu0 0.0
        %1444 = vmatprep.subr.mxu0 0.0
        %1445 = vmatpush1.msra.mxu0 0.0
        %1446 = vmatprep.subr.mxu0 0.0
        %1447 = vmatpush1.msra.mxu0 0.0
        %1448 = vmatprep.subr.mxu0 0.0
        %1449 = vmatpush1.msra.mxu0 0.0
        %1450 = vmatprep.subr.mxu0 0.0
        %1451 = vmatpush1.msra.mxu0 0.0
        %1452 = vmatprep.subr.mxu0 0.0
        %1453 = vmatpush1.msra.mxu0 0.0
        %1454 = vmatprep.subr.mxu0 0.0
        %1455 = vmatpush1.msra.mxu0 0.0
        %1456 = vmatprep.subr.mxu0 0.0
        %1457 = vmatpush1.msra.mxu0 0.0
        %1458 = vmatprep.subr.mxu0 0.0
        %1459 = vmatpush1.msra.mxu0 0.0
        %1460 = vmatprep.subr.mxu0 0.0
        %1461 = vmatpush1.msra.mxu0 0.0
        %1462 = vmatprep.subr.mxu0 0.0
        %1463 = vmatpush1.msra.mxu0 0.0
        %1464 = vmatprep.subr.mxu0 0.0
        %1465 = vmatpush1.msra.mxu0 0.0
        %1466 = vmatprep.subr.mxu0 0.0
        %1467 = vmatpush1.msra.mxu0 0.0
        %1468 = vmatprep.subr.mxu0 0.0
        %1469 = vmatpush1.msra.mxu0 0.0
        %1470 = vmatprep.subr.mxu0 0.0
        %1471 = vmatpush1.msra.mxu0 0.0
        %1472 = vmatprep.subr.mxu0 0.0
        %1473 = vmatpush1.msra.mxu0 0.0
        %1474 = vmatprep.subr.mxu0 0.0
        %1475 = vmatpush1.msra.mxu0 0.0
        %1476 = vmatprep.subr.mxu0 0.0
        %1477 = vmatpush1.msra.mxu0 0.0
        %1478 = vmatprep.subr.mxu0 0.0
        %1479 = vmatpush1.msra.mxu0 0.0
        %1480 = vmatprep.subr.mxu0 0.0
        %1481 = vmatpush1.msra.mxu0 0.0
        %1482 = vmatprep.subr.mxu0 0.0
        %1483 = vmatpush1.msra.mxu0 0.0
        %1484 = vmatprep.subr.mxu0 0.0
        %1485 = vmatpush1.msra.mxu0 0.0
        %1486 = vmatprep.subr.mxu0 0.0
        %1487 = vmatpush1.msra.mxu0 0.0
        %1488 = vmatprep.subr.mxu0 0.0
        %1489 = vmatpush1.msra.mxu0 0.0
        %1490 = vmatprep.subr.mxu0 0.0
        %1491 = vmatpush1.msra.mxu0 0.0
        %1492 = vmatprep.subr.mxu0 0.0
        %1493 = vmatpush1.msra.mxu0 0.0
        %1494 = vmatprep.subr.mxu0 0.0
        %1495 = vmatpush1.msra.mxu0 0.0
        %1496 = vmatprep.subr.mxu0 0.0
        %1497 = vmatpush1.msra.mxu0 0.0
        %1498 = vmatprep.subr.mxu0 0.0
        %1499 = vmatpush1.msra.mxu0 0.0
        %1500 = vmatprep.mubr.f32.mxu0 0.0
        %1501 = vmatmul.mubr.f32.gmra.mrb[0].mxu0 %v1431
        %v1502 = vpop.f32.mrb[0].mxu0
        %v1503 = vadd.f32 0.0, %v1502
        %v1504 = vpop.f32.mrb[0].mxu0
        %1505 = vmatprep.mubr.f32.mxu0 0.0
        %1506 = vmatmul.mubr.f32.gmra.mrb[0].mxu0 %v1434
        %v1507 = vpop.f32.mrb[0].mxu0
        %v1508 = vadd.f32 0.0, %v1507
        %v1509 = vpop.f32.mrb[0].mxu0
        %1510 = vdwg.mxu0
        %v1512 = vsel %vm1179, %v1266, 0
        %v1515 = vsel %vm1179, %v1267, 0
        %1517 = vmatprep.subr.mxu0 0.0
        %1518 = vmatpush1.msra.mxu0 %v817
        %1519 = vmatprep.subr.mxu0 0.0
        %1520 = vmatpush1.msra.mxu0 %v819
        %1521 = vmatprep.subr.mxu0 0.0
        %1522 = vmatpush1.msra.mxu0 0.0
        %1523 = vmatprep.subr.mxu0 0.0
        %1524 = vmatpush1.msra.mxu0 0.0
        %1525 = vmatprep.subr.mxu0 0.0
        %1526 = vmatpush1.msra.mxu0 0.0
        %1527 = vmatprep.subr.mxu0 0.0
        %1528 = vmatpush1.msra.mxu0 0.0
        %1529 = vmatprep.subr.mxu0 0.0
        %1530 = vmatpush1.msra.mxu0 0.0
        %1531 = vmatprep.subr.mxu0 0.0
        %1532 = vmatpush1.msra.mxu0 0.0
        %1533 = vmatprep.subr.mxu0 0.0
        %1534 = vmatpush1.msra.mxu0 0.0
        %1535 = vmatprep.subr.mxu0 0.0
        %1536 = vmatpush1.msra.mxu0 0.0
        %1537 = vmatprep.subr.mxu0 0.0
        %1538 = vmatpush1.msra.mxu0 0.0
        %1539 = vmatprep.subr.mxu0 0.0
        %1540 = vmatpush1.msra.mxu0 0.0
        %1541 = vmatprep.subr.mxu0 0.0
        %1542 = vmatpush1.msra.mxu0 0.0
        %1543 = vmatprep.subr.mxu0 0.0
        %1544 = vmatpush1.msra.mxu0 0.0
        %1545 = vmatprep.subr.mxu0 0.0
        %1546 = vmatpush1.msra.mxu0 0.0
        %1547 = vmatprep.subr.mxu0 0.0
        %1548 = vmatpush1.msra.mxu0 0.0
        %1549 = vmatprep.subr.mxu0 0.0
        %1550 = vmatpush1.msra.mxu0 0.0
        %1551 = vmatprep.subr.mxu0 0.0
        %1552 = vmatpush1.msra.mxu0 0.0
        %1553 = vmatprep.subr.mxu0 0.0
        %1554 = vmatpush1.msra.mxu0 0.0
        %1555 = vmatprep.subr.mxu0 0.0
        %1556 = vmatpush1.msra.mxu0 0.0
        %1557 = vmatprep.subr.mxu0 0.0
        %1558 = vmatpush1.msra.mxu0 0.0
        %1559 = vmatprep.subr.mxu0 0.0
        %1560 = vmatpush1.msra.mxu0 0.0
        %1561 = vmatprep.subr.mxu0 0.0
        %1562 = vmatpush1.msra.mxu0 0.0
        %1563 = vmatprep.subr.mxu0 0.0
        %1564 = vmatpush1.msra.mxu0 0.0
        %1565 = vmatprep.subr.mxu0 0.0
        %1566 = vmatpush1.msra.mxu0 0.0
        %1567 = vmatprep.subr.mxu0 0.0
        %1568 = vmatpush1.msra.mxu0 0.0
        %1569 = vmatprep.subr.mxu0 0.0
        %1570 = vmatpush1.msra.mxu0 0.0
        %1571 = vmatprep.subr.mxu0 0.0
        %1572 = vmatpush1.msra.mxu0 0.0
        %1573 = vmatprep.subr.mxu0 0.0
        %1574 = vmatpush1.msra.mxu0 0.0
        %1575 = vmatprep.subr.mxu0 0.0
        %1576 = vmatpush1.msra.mxu0 0.0
        %1577 = vmatprep.subr.mxu0 0.0
        %1578 = vmatpush1.msra.mxu0 0.0
        %1579 = vmatprep.subr.mxu0 0.0
        %1580 = vmatpush1.msra.mxu0 0.0
        %1581 = vmatprep.mubr.f32.mxu0 0.0
        %1582 = vmatmul.mubr.f32.gmra.mrb[0].mxu0 %v1512
        %v1583 = vpop.f32.mrb[0].mxu0
        %v1584 = vadd.f32 0.0, %v1583
        %v1585 = vpop.f32.mrb[0].mxu0
        %1586 = vmatprep.mubr.f32.mxu0 0.0
        %1587 = vmatmul.mubr.f32.gmra.mrb[0].mxu0 %v1515
        %v1588 = vpop.f32.mrb[0].mxu0
        %v1589 = vadd.f32 0.0, %v1588
        %v1590 = vpop.f32.mrb[0].mxu0
        %1591 = vdwg.mxu0
        %1594 = vrot.lane.b32.xlu0 %v1422, 8
        %v1595 = vpop.permute.xlu0 %1594
        %1596 = vrot.lane.b32.xlu0 %v1427, 8
        %v1597 = vpop.permute.xlu0 %1596
        %1602 = vrot.lane.b32.xlu0 %v1503, 16
        %v1603 = vpop.permute.xlu0 %1602
        %1604 = vrot.lane.b32.xlu0 %v1508, 16
        %v1605 = vpop.permute.xlu0 %1604
        %1610 = vrot.lane.b32.xlu0 %v1584, 24
        %v1611 = vpop.permute.xlu0 %1610
        %1612 = vrot.lane.b32.xlu0 %v1589, 24
        %v1613 = vpop.permute.xlu0 %1612
        %v1616 = vsel %vm826, %v1341, %v1595
        %v1617 = vsel %vm826, %v1346, %v1597
        %v1618 = vsel %vm1179, %v1616, %v1603
        %v1619 = vsel %vm1179, %v1617, %v1605
        %vm1620 = vcmask 195584
        %v1621 = vsel %vm1620, %v1618, %v1611
        %v1622 = vsel %vm1620, %v1619, %v1613
        %v1623 = vld [vmem:[%s6] sm:$0xff]
        %v1624 = vld [vmem:[%s6 + $0x8] sm:$0xff]
        %v1625 = vld [vmem:[%s6 + $0x10] sm:$0xff]
        %v1626 = vld [vmem:[%s6 + $0x18] sm:$0xff]
        %v1627 = vld [vmem:[%s7] sm:$0x1]
        %v1629 = vlaneseq
        %v1630 = vshrl.u32 %v1629, 7
        %v1631 = vsub.s32 0, %v1630
        %v1632 = vrot.slane %v1627, %v1631
        %v1635 = vsel %vm600, %v1621, 0
        %v1638 = vsel %vm600, %v1622, 0
        %1640 = vmatprep.subr.mxu0 0.0
        %1641 = vmatpush1.msra.mxu0 %v1623
        %1642 = vmatprep.subr.mxu0 0.0
        %1643 = vmatpush1.msra.mxu0 %v1624
        %1644 = vmatprep.subr.mxu0 0.0
        %1645 = vmatpush1.msra.mxu0 %v1625
        %1646 = vmatprep.subr.mxu0 0.0
        %1647 = vmatpush1.msra.mxu0 %v1626
        %1648 = vmatprep.subr.mxu0 0.0
        %1649 = vmatpush1.msra.mxu0 0.0
        %1650 = vmatprep.subr.mxu0 0.0
        %1651 = vmatpush1.msra.mxu0 0.0
        %1652 = vmatprep.subr.mxu0 0.0
        %1653 = vmatpush1.msra.mxu0 0.0
        %1654 = vmatprep.subr.mxu0 0.0
        %1655 = vmatpush1.msra.mxu0 0.0
        %1656 = vmatprep.subr.mxu0 0.0
        %1657 = vmatpush1.msra.mxu0 0.0
        %1658 = vmatprep.subr.mxu0 0.0
        %1659 = vmatpush1.msra.mxu0 0.0
        %1660 = vmatprep.subr.mxu0 0.0
        %1661 = vmatpush1.msra.mxu0 0.0
        %1662 = vmatprep.subr.mxu0 0.0
        %1663 = vmatpush1.msra.mxu0 0.0
        %1664 = vmatprep.subr.mxu0 0.0
        %1665 = vmatpush1.msra.mxu0 0.0
        %1666 = vmatprep.subr.mxu0 0.0
        %1667 = vmatpush1.msra.mxu0 0.0
        %1668 = vmatprep.subr.mxu0 0.0
        %1669 = vmatpush1.msra.mxu0 0.0
        %1670 = vmatprep.subr.mxu0 0.0
        %1671 = vmatpush1.msra.mxu0 0.0
        %1672 = vmatprep.subr.mxu0 0.0
        %1673 = vmatpush1.msra.mxu0 0.0
        %1674 = vmatprep.subr.mxu0 0.0
        %1675 = vmatpush1.msra.mxu0 0.0
        %1676 = vmatprep.subr.mxu0 0.0
        %1677 = vmatpush1.msra.mxu0 0.0
        %1678 = vmatprep.subr.mxu0 0.0
        %1679 = vmatpush1.msra.mxu0 0.0
        %1680 = vmatprep.subr.mxu0 0.0
        %1681 = vmatpush1.msra.mxu0 0.0
        %1682 = vmatprep.subr.mxu0 0.0
        %1683 = vmatpush1.msra.mxu0 0.0
        %1684 = vmatprep.subr.mxu0 0.0
        %1685 = vmatpush1.msra.mxu0 0.0
        %1686 = vmatprep.subr.mxu0 0.0
        %1687 = vmatpush1.msra.mxu0 0.0
        %1688 = vmatprep.subr.mxu0 0.0
        %1689 = vmatpush1.msra.mxu0 0.0
        %1690 = vmatprep.subr.mxu0 0.0
        %1691 = vmatpush1.msra.mxu0 0.0
        %1692 = vmatprep.subr.mxu0 0.0
        %1693 = vmatpush1.msra.mxu0 0.0
        %1694 = vmatprep.subr.mxu0 0.0
        %1695 = vmatpush1.msra.mxu0 0.0
        %1696 = vmatprep.subr.mxu0 0.0
        %1697 = vmatpush1.msra.mxu0 0.0
        %1698 = vmatprep.subr.mxu0 0.0
        %1699 = vmatpush1.msra.mxu0 0.0
        %1700 = vmatprep.subr.mxu0 0.0
        %1701 = vmatpush1.msra.mxu0 0.0
        %1702 = vmatprep.subr.mxu0 0.0
        %1703 = vmatpush1.msra.mxu0 0.0
        %1704 = vmatprep.mubr.f32.mxu0 0.0
        %1705 = vmatmul.mubr.f32.gmra.mrb[0].mxu0 %v1635
        %v1706 = vpop.f32.mrb[0].mxu0
        %v1707 = vadd.f32 %v1632, %v1706
        %v1708 = vpop.f32.mrb[0].mxu0
        %1709 = vmatprep.mubr.f32.mxu0 0.0
        %1710 = vmatmul.mubr.f32.gmra.mrb[0].mxu0 %v1638
        %v1711 = vpop.f32.mrb[0].mxu0
        %v1712 = vadd.f32 %v1632, %v1711
        %v1713 = vpop.f32.mrb[0].mxu0
        %1714 = vdwg.mxu0
        %v1715 = vadd.f32 %v583, %v1707
        %v1716 = vadd.f32 %v584, %v1712
        %v1717 = vld [vmem:[%s8] sm:$0x1]
        %v1718 = vld [vmem:[%s9] sm:$0x1]
        %v1719 = vsel %vm600, %v1715, 0.0
        %1720 = vadd.xlane.f32.xlu0 %v1719
        %v1721 = vpop.xlane.xlu0 %1720
        %v1722 = vsel %vm600, %v1716, 0.0
        %1723 = vadd.xlane.f32.xlu0 %v1722
        %v1724 = vpop.xlane.xlu0 %1723
        %v1725 = vrcp.pop 32.0
        %v1726 = vmul.f32 %v1721, %v1725
        %v1727 = vmul.f32 %v1724, %v1725
        %v1728 = vsub.f32 %v1715, %v1726
        %v1729 = vsub.f32 %v1716, %v1727
        %v1730 = vmul.f32 %v1728, %v1728
        %v1731 = vmul.f32 %v1729, %v1729
        %v1732 = vsel %vm600, %v1730, 0.0
        %1733 = vadd.xlane.f32.xlu0 %v1732
        %v1734 = vpop.xlane.xlu0 %1733
        %v1735 = vsel %vm600, %v1731, 0.0
        %1736 = vadd.xlane.f32.xlu0 %v1735
        %v1737 = vpop.xlane.xlu0 %1736
        %v1738 = vmul.f32 %v1734, %v1725
        %v1739 = vmul.f32 %v1737, %v1725
        %v1740 = vadd.f32 %v1738, 1e-05
        %v1741 = vadd.f32 %v1739, 1e-05
        %v1742 = vrsqrt.pop %v1740
        %v1743 = vrsqrt.pop %v1741
        %v1744 = vmul.f32 %v1728, %v1742
        %v1745 = vmul.f32 %v1729, %v1743
        %v1747 = vlaneseq
        %v1748 = vshrl.u32 %v1747, 7
        %v1749 = vsub.s32 0, %v1748
        %v1750 = vrot.slane %v1717, %v1749
        %v1752 = vmul.f32 %v1744, %v1750
        %v1753 = vmul.f32 %v1745, %v1750
        %v1755 = vlaneseq
        %v1756 = vshrl.u32 %v1755, 7
        %v1757 = vsub.s32 0, %v1756
        %v1758 = vrot.slane %v1718, %v1757
        %v1760 = vadd.f32 %v1752, %v1758
        %v1761 = vadd.f32 %v1753, %v1758
        %v1762 = vld [vmem:[#allocation3] sm:$0xff]
        %v1763 = vld [vmem:[#allocation3 + $0x8] sm:$0xff]
        %v1764 = vld [vmem:[#allocation3 + $0x10] sm:$0xff]
        %v1765 = vld [vmem:[#allocation3 + $0x18] sm:$0xff]
        %v1766 = vld [vmem:[%s11] sm:$0x1]
        %v1768 = vlaneseq
        %v1769 = vshrl.u32 %v1768, 7
        %v1770 = vsub.s32 0, %v1769
        %v1771 = vrot.slane %v1766, %v1770
        %v1774 = vsel %vm600, %v1760, 0
        %v1777 = vsel %vm600, %v1761, 0
        %1779 = vmatprep.subr.mxu0 0.0
        %1780 = vmatpush1.msra.mxu0 %v1762
        %1781 = vmatprep.subr.mxu0 0.0
        %1782 = vmatpush1.msra.mxu0 %v1763
        %1783 = vmatprep.subr.mxu0 0.0
        %1784 = vmatpush1.msra.mxu0 %v1764
        %1785 = vmatprep.subr.mxu0 0.0
        %1786 = vmatpush1.msra.mxu0 %v1765
        %1787 = vmatprep.subr.mxu0 0.0
        %1788 = vmatpush1.msra.mxu0 0.0
        %1789 = vmatprep.subr.mxu0 0.0
        %1790 = vmatpush1.msra.mxu0 0.0
        %1791 = vmatprep.subr.mxu0 0.0
        %1792 = vmatpush1.msra.mxu0 0.0
        %1793 = vmatprep.subr.mxu0 0.0
        %1794 = vmatpush1.msra.mxu0 0.0
        %1795 = vmatprep.subr.mxu0 0.0
        %1796 = vmatpush1.msra.mxu0 0.0
        %1797 = vmatprep.subr.mxu0 0.0
        %1798 = vmatpush1.msra.mxu0 0.0
        %1799 = vmatprep.subr.mxu0 0.0
        %1800 = vmatpush1.msra.mxu0 0.0
        %1801 = vmatprep.subr.mxu0 0.0
        %1802 = vmatpush1.msra.mxu0 0.0
        %1803 = vmatprep.subr.mxu0 0.0
        %1804 = vmatpush1.msra.mxu0 0.0
        %1805 = vmatprep.subr.mxu0 0.0
        %1806 = vmatpush1.msra.mxu0 0.0
        %1807 = vmatprep.subr.mxu0 0.0
        %1808 = vmatpush1.msra.mxu0 0.0
        %1809 = vmatprep.subr.mxu0 0.0
        %1810 = vmatpush1.msra.mxu0 0.0
        %1811 = vmatprep.subr.mxu0 0.0
        %1812 = vmatpush1.msra.mxu0 0.0
        %1813 = vmatprep.subr.mxu0 0.0
        %1814 = vmatpush1.msra.mxu0 0.0
        %1815 = vmatprep.subr.mxu0 0.0
        %1816 = vmatpush1.msra.mxu0 0.0
        %1817 = vmatprep.subr.mxu0 0.0
        %1818 = vmatpush1.msra.mxu0 0.0
        %1819 = vmatprep.subr.mxu0 0.0
        %1820 = vmatpush1.msra.mxu0 0.0
        %1821 = vmatprep.subr.mxu0 0.0
        %1822 = vmatpush1.msra.mxu0 0.0
        %1823 = vmatprep.subr.mxu0 0.0
        %1824 = vmatpush1.msra.mxu0 0.0
        %1825 = vmatprep.subr.mxu0 0.0
        %1826 = vmatpush1.msra.mxu0 0.0
        %1827 = vmatprep.subr.mxu0 0.0
        %1828 = vmatpush1.msra.mxu0 0.0
        %1829 = vmatprep.subr.mxu0 0.0
        %1830 = vmatpush1.msra.mxu0 0.0
        %1831 = vmatprep.subr.mxu0 0.0
        %1832 = vmatpush1.msra.mxu0 0.0
        %1833 = vmatprep.subr.mxu0 0.0
        %1834 = vmatpush1.msra.mxu0 0.0
        %1835 = vmatprep.subr.mxu0 0.0
        %1836 = vmatpush1.msra.mxu0 0.0
        %1837 = vmatprep.subr.mxu0 0.0
        %1838 = vmatpush1.msra.mxu0 0.0
        %1839 = vmatprep.subr.mxu0 0.0
        %1840 = vmatpush1.msra.mxu0 0.0
        %1841 = vmatprep.subr.mxu0 0.0
        %1842 = vmatpush1.msra.mxu0 0.0
        %1843 = vmatprep.mubr.f32.mxu0 0.0
        %1844 = vmatmul.mubr.f32.gmra.mrb[0].mxu0 %v1774
        %v1845 = vpop.f32.mrb[0].mxu0
        %v1846 = vadd.f32 %v1771, %v1845
        %v1847 = vpop.f32.mrb[0].mxu0
        %1848 = vmatprep.mubr.f32.mxu0 0.0
        %1849 = vmatmul.mubr.f32.gmra.mrb[0].mxu0 %v1777
        %v1850 = vpop.f32.mrb[0].mxu0
        %v1851 = vadd.f32 %v1771, %v1850
        %v1852 = vpop.f32.mrb[0].mxu0
        %1853 = vdwg.mxu0
        %s1854 = sld [smem:[#allocation2]]
        %vm1855 = vcmp.ge.f32.partialorder %v1846, 0.0
        %vm1856 = vcmp.ge.f32.partialorder %v1851, 0.0
        %v1857 = vstv %s1854
        %v1858 = vmul.f32 %v1857, %v1846
        %v1859 = vmul.f32 %v1857, %v1851
        %v1860 = vsel %vm1855, %v1846, %v1858
        %v1861 = vsel %vm1856, %v1851, %v1859
        %v1862 = vld [vmem:[%s12] sm:$0xff]
        %v1863 = vld [vmem:[%s12 + $0x8] sm:$0xff]
        %v1864 = vld [vmem:[%s12 + $0x10] sm:$0xff]
        %v1865 = vld [vmem:[%s12 + $0x18] sm:$0xff]
        %v1866 = vld [vmem:[%s12 + $0x20] sm:$0xff]
        %v1867 = vld [vmem:[%s12 + $0x28] sm:$0xff]
        %v1868 = vld [vmem:[%s12 + $0x30] sm:$0xff]
        %v1869 = vld [vmem:[%s12 + $0x38] sm:$0xff]
        %v1870 = vld [vmem:[%s12 + $0x40] sm:$0xff]
        %v1871 = vld [vmem:[%s12 + $0x48] sm:$0xff]
        %v1872 = vld [vmem:[%s12 + $0x50] sm:$0xff]
        %v1873 = vld [vmem:[%s12 + $0x58] sm:$0xff]
        %v1874 = vld [vmem:[%s12 + $0x60] sm:$0xff]
        %v1875 = vld [vmem:[%s12 + $0x68] sm:$0xff]
        %v1876 = vld [vmem:[%s12 + $0x70] sm:$0xff]
        %v1877 = vld [vmem:[%s12 + $0x78] sm:$0xff]
        %v1878 = vld [vmem:[%s13] sm:$0x1]
        %v1880 = vlaneseq
        %v1881 = vshrl.u32 %v1880, 7
        %v1882 = vsub.s32 0, %v1881
        %v1883 = vrot.slane %v1878, %v1882
        %1885 = vmatprep.subr.mxu0 0.0
        %1886 = vmatpush1.msra.mxu0 %v1862
        %1887 = vmatprep.subr.mxu0 0.0
        %1888 = vmatpush1.msra.mxu0 %v1863
        %1889 = vmatprep.subr.mxu0 0.0
        %1890 = vmatpush1.msra.mxu0 %v1864
        %1891 = vmatprep.subr.mxu0 0.0
        %1892 = vmatpush1.msra.mxu0 %v1865
        %1893 = vmatprep.subr.mxu0 0.0
        %1894 = vmatpush1.msra.mxu0 %v1866
        %1895 = vmatprep.subr.mxu0 0.0
        %1896 = vmatpush1.msra.mxu0 %v1867
        %1897 = vmatprep.subr.mxu0 0.0
        %1898 = vmatpush1.msra.mxu0 %v1868
        %1899 = vmatprep.subr.mxu0 0.0
        %1900 = vmatpush1.msra.mxu0 %v1869
        %1901 = vmatprep.subr.mxu0 0.0
        %1902 = vmatpush1.msra.mxu0 %v1870
        %1903 = vmatprep.subr.mxu0 0.0
        %1904 = vmatpush1.msra.mxu0 %v1871
        %1905 = vmatprep.subr.mxu0 0.0
        %1906 = vmatpush1.msra.mxu0 %v1872
        %1907 = vmatprep.subr.mxu0 0.0
        %1908 = vmatpush1.msra.mxu0 %v1873
        %1909 = vmatprep.subr.mxu0 0.0
        %1910 = vmatpush1.msra.mxu0 %v1874
        %1911 = vmatprep.subr.mxu0 0.0
        %1912 = vmatpush1.msra.mxu0 %v1875
        %1913 = vmatprep.subr.mxu0 0.0
        %1914 = vmatpush1.msra.mxu0 %v1876
        %1915 = vmatprep.subr.mxu0 0.0
        %1916 = vmatpush1.msra.mxu0 %v1877
        %1917 = vmatprep.subr.mxu0 0.0
        %1918 = vmatpush1.msra.mxu0 0.0
        %1919 = vmatprep.subr.mxu0 0.0
        %1920 = vmatpush1.msra.mxu0 0.0
        %1921 = vmatprep.subr.mxu0 0.0
        %1922 = vmatpush1.msra.mxu0 0.0
        %1923 = vmatprep.subr.mxu0 0.0
        %1924 = vmatpush1.msra.mxu0 0.0
        %1925 = vmatprep.subr.mxu0 0.0
        %1926 = vmatpush1.msra.mxu0 0.0
        %1927 = vmatprep.subr.mxu0 0.0
        %1928 = vmatpush1.msra.mxu0 0.0
        %1929 = vmatprep.subr.mxu0 0.0
        %1930 = vmatpush1.msra.mxu0 0.0
        %1931 = vmatprep.subr.mxu0 0.0
        %1932 = vmatpush1.msra.mxu0 0.0
        %1933 = vmatprep.subr.mxu0 0.0
        %1934 = vmatpush1.msra.mxu0 0.0
        %1935 = vmatprep.subr.mxu0 0.0
        %1936 = vmatpush1.msra.mxu0 0.0
        %1937 = vmatprep.subr.mxu0 0.0
        %1938 = vmatpush1.msra.mxu0 0.0
        %1939 = vmatprep.subr.mxu0 0.0
        %1940 = vmatpush1.msra.mxu0 0.0
        %1941 = vmatprep.subr.mxu0 0.0
        %1942 = vmatpush1.msra.mxu0 0.0
        %1943 = vmatprep.subr.mxu0 0.0
        %1944 = vmatpush1.msra.mxu0 0.0
        %1945 = vmatprep.subr.mxu0 0.0
        %1946 = vmatpush1.msra.mxu0 0.0
        %1947 = vmatprep.subr.mxu0 0.0
        %1948 = vmatpush1.msra.mxu0 0.0
        %1949 = vmatprep.mubr.f32.mxu0 0.0
        %1950 = vmatmul.mubr.f32.gmra.mrb[0].mxu0 %v1860
        %v1951 = vpop.f32.mrb[0].mxu0
        %v1952 = vadd.f32 %v1883, %v1951
        %v1953 = vpop.f32.mrb[0].mxu0
        %1954 = vmatprep.mubr.f32.mxu0 0.0
        %1955 = vmatmul.mubr.f32.gmra.mrb[0].mxu0 %v1861
        %v1956 = vpop.f32.mrb[0].mxu0
        %v1957 = vadd.f32 %v1883, %v1956
        %v1958 = vpop.f32.mrb[0].mxu0
        %1959 = vdwg.mxu0
        %v1960 = vadd.f32 %v1760, %v1952
        %v1961 = vadd.f32 %v1761, %v1957
        %v1962 = vld [vmem:[%s14] sm:$0x1]
        %v1963 = vld [vmem:[%s15] sm:$0x1]
        %v1964 = vsel %vm600, %v1960, 0.0
        %1965 = vadd.xlane.f32.xlu0 %v1964
        %v1966 = vpop.xlane.xlu0 %1965
        %v1967 = vsel %vm600, %v1961, 0.0
        %1968 = vadd.xlane.f32.xlu0 %v1967
        %v1969 = vpop.xlane.xlu0 %1968
        %v1970 = vmul.f32 %v1966, %v1725
        %v1971 = vmul.f32 %v1969, %v1725
        %v1972 = vsub.f32 %v1960, %v1970
        %v1973 = vsub.f32 %v1961, %v1971
        %v1974 = vmul.f32 %v1972, %v1972
        %v1975 = vmul.f32 %v1973, %v1973
        %v1976 = vsel %vm600, %v1974, 0.0
        %1977 = vadd.xlane.f32.xlu0 %v1976
        %v1978 = vpop.xlane.xlu0 %1977
        %v1979 = vsel %vm600, %v1975, 0.0
        %1980 = vadd.xlane.f32.xlu0 %v1979
        %v1981 = vpop.xlane.xlu0 %1980
        %v1982 = vmul.f32 %v1978, %v1725
        %v1983 = vmul.f32 %v1981, %v1725
        %v1984 = vadd.f32 %v1982, 1e-05
        %v1985 = vadd.f32 %v1983, 1e-05
        %v1986 = vrsqrt.pop %v1984
        %v1987 = vrsqrt.pop %v1985
        %v1988 = vmul.f32 %v1972, %v1986
        %v1989 = vmul.f32 %v1973, %v1987
        %v1991 = vlaneseq
        %v1992 = vshrl.u32 %v1991, 7
        %v1993 = vsub.s32 0, %v1992
        %v1994 = vrot.slane %v1962, %v1993
        %v1996 = vmul.f32 %v1988, %v1994
        %v1997 = vmul.f32 %v1989, %v1994
        %v1999 = vlaneseq
        %v2000 = vshrl.u32 %v1999, 7
        %v2001 = vsub.s32 0, %v2000
        %v2002 = vrot.slane %v1963, %v2001
        %v2004 = vadd.f32 %v1996, %v2002
        %v2005 = vadd.f32 %v1997, %v2002
        %2006 = vst.msk [vmem:[%s572] sm:$0xff] %vm600, %v2004
        %2007 = vst.msk [vmem:[%s572 + $0x8] sm:$0xff] %vm600, %v2005
        %s2008 = sand.u32 %s408, 1
        %s2009 = scalar_lea.sflag [#allocation5], %s2008
        %s2010 = sand.u32 %s408, 1
        %s2011 = smul.addr %s2010, 16
        %s2012 = scalar_lea.vmem [#allocation6], %s2011
        // Predicated region
        $region93: #{tpu_custom_call.1} parent=87 // pred_check
          %p2013 = pneg %p418
        $region94: #{tpu_custom_call.1} parent=87 // pred_check_branch
          %2015 = sbr.rel (%p2013) target = $region96
        $region95: #{tpu_custom_call.1} parent=87 // pred_region
          %s2017 = ssub.s32 256, 256
          %2018 = vsyncadd %s2009, %s2017
          %s2019 = smul.addr %s33, 2
          %s2020 = smul.addr %s2019, 128
          %s2021 = scalar_lea.hbm %s17, %s2020
          %s2022 = sshll.u32 %s2012, 4
          %s2023 = int_to_ptr.vmem [resolvable:$true] %s2022
          %2028 = dma.vmem_to_hbm [thread:$0]  %s2023, 256, %s2021, %s2009, 128, 128, 8
        $region96: #{tpu_custom_call.1} parent=87 // pred_fallthru
          _
      $region88: #{tpu_custom_call.1} parent=5 // pred_fallthru
        _
      %p2029 = scmp.le.s32.totalorder 2, %s28
      // Predicated region
      $region97: #{tpu_custom_call.1} parent=5 // pred_check
        %p2030 = pneg %p2029
      $region98: #{tpu_custom_call.1} parent=5 // pred_check_branch
        %2032 = sbr.rel (%p2030) target = $region100
      $region99: #{tpu_custom_call.1} parent=5 // pred_region
        %s2033 = ssub.s32 %s28, 2
        // Predicated region
        $region101: #{tpu_custom_call.1} parent=99 // pred_check
          %p2034 = pneg %p424
        $region102: #{tpu_custom_call.1} parent=99 // pred_check_branch
          %2036 = sbr.rel (%p2034) target = $region104
        $region103: #{tpu_custom_call.1} parent=99 // pred_region
          %s2037 = sand.u32 %s409, 1
          %s2038 = scalar_lea.sflag [#allocation5], %s2037
          %s2039 = sand.u32 %s409, 1
          %s2040 = smul.addr %s2039, 16
          %s2041 = scalar_lea.vmem [#allocation6], %s2040
          %2042 = dma.done %s2038, 256
        $region104: #{tpu_custom_call.1} parent=99 // pred_fallthru
          _
      $region100: #{tpu_custom_call.1} parent=5 // pred_fallthru
        _
    $region6: #{tpu_custom_call.1} parent=1 // loop_footer
      %s32 = sadd.s32 1, %s28
    $region7: #{tpu_custom_call.1} parent=1 // loop_footer_branch
      %27 = sbr.rel target = $region3
    $region8: #{tpu_custom_call.1} parent=1 // loop_exit
      _
    %2043 = vsyncpa [#allocation4], 1
    %s2044 = scalar_lea.sflag [#allocation4], 1
    %2045 = vsyncpa %s2044, 1
    %2046 = vsyncpa [#allocation5], 1
    %s2047 = scalar_lea.sflag [#allocation5], 1
    %2048 = vsyncpa %s2047, 1

</llo_original>
